<compile_context>
chip_gen: v7x
topology: tpu7x:2x2x1
jax: 0.10.0
libtpu: 0.0.40
codegen_flags: <defaults>
</compile_context>

<pallas_src>
import functools

import jax
import jax.numpy as jnp
from jax import lax
from jax.experimental import pallas as pl
from jax.experimental.pallas import tpu as pltpu
from jax.scipy.linalg import block_diag

EMBED_SIZE = 256
HEADS = 8
HEAD_DIM = EMBED_SIZE // HEADS  # 32


# ---------------------------------------------------------------------------
# Fused kernel. Per grid step: TB batch elements x one TQ-long query tile,
# all heads + fc_out.
#   q ref      : (TB, TQ, E)    lane-dense, E = 256
#   k/v refs   : (TB, Lk, E)    full key/value length per step
#   wq/wk/wv   : (E, E) bf16    block-diagonal W.T (scale folded into wq)
#   w_fc       : (E, E) bf16    fc_out weight, pre-transposed
#   b_fc       : (1, E) f32     fc_out bias row
#   o ref      : (TB, TQ, E)
#   attn ref   : (TB, TQ, H*Lk) lane-dense attn slab (wrapper reshapes)
#   ctx ref    : (TB*TQ, E) f32 VMEM scratch slab
# ---------------------------------------------------------------------------
def _mha_kernel(q_ref, k_ref, v_ref, wq_ref, wk_ref, wv_ref, wfc_ref, b_ref,
                o_ref, attn_ref, ctx_ref, *, heads, head_dim):
    tb, tq, E = q_ref.shape
    _, lk, _ = k_ref.shape
    _, lv, _ = v_ref.shape

    # All-head projections as single lane-dense MXU matmuls, bf16 in / f32 acc.
    q_in = q_ref[...].reshape(tb * tq, E).astype(jnp.bfloat16)
    k_in = k_ref[...].reshape(tb * lk, E).astype(jnp.bfloat16)
    v_in = v_ref[...].reshape(tb * lv, E).astype(jnp.bfloat16)

    q_proj = jnp.dot(q_in, wq_ref[...], preferred_element_type=jnp.float32)
    k_proj = jnp.dot(k_in, wk_ref[...], preferred_element_type=jnp.float32)
    v_proj = jnp.dot(v_in, wv_ref[...], preferred_element_type=jnp.float32)

    for b in range(tb):  # static unroll (TB small)
        qb = q_proj[b * tq:(b + 1) * tq].astype(jnp.bfloat16)   # (TQ, E)
        kb = k_proj[b * lk:(b + 1) * lk].astype(jnp.bfloat16)   # (Lk, E)
        vb = v_proj[b * lv:(b + 1) * lv].astype(jnp.bfloat16)   # (Lv, E)
        for h in range(heads):  # static unroll, heads = 8
            lo = h * head_dim
            hi = lo + head_dim
            # energy = qh @ kh^T (contract over D, no transpose); scale is
            # already folded into wq.
            energy = lax.dot_general(
                qb[:, lo:hi], kb[:, lo:hi], (((1,), (1,)), ((), ())),
                preferred_element_type=jnp.float32)              # (TQ, Lk) f32
            # softmax over the key axis; divide goes through the EUP.
            m = jnp.max(energy, axis=-1, keepdims=True)
            p = jnp.exp(energy - m)
            attn = p * pl.reciprocal(jnp.sum(p, axis=-1, keepdims=True))
            attn_ref[b, :, h * lk:(h + 1) * lk] = attn
            # per-head context written into the lane-dense scratch slab.
            ctx_ref[b * tq:(b + 1) * tq, lo:hi] = jnp.dot(
                attn.astype(jnp.bfloat16), vb[:, lo:hi],
                preferred_element_type=jnp.float32)

    # Fused fc_out: ctx @ W_fc.T + b, one lane-dense MXU matmul.
    ctx = ctx_ref[...].astype(jnp.bfloat16)                      # (TB*TQ, E)
    out = jnp.dot(ctx, wfc_ref[...], preferred_element_type=jnp.float32)
    o_ref[...] = (out + b_ref[...]).reshape(tb, tq, E)


# ---------------------------------------------------------------------------
# One-time weight preparation (hoisted off the per-call critical path):
#   per-head (D, D) Linear weight W -> block-diagonal (E, E) W.T (bf16),
#   softmax scale folded into wq, fc_out weight pre-transposed (bf16),
#   fc_out bias as a (1, E) f32 row.
# ---------------------------------------------------------------------------
def prepare_params(params):
    E, H = EMBED_SIZE, HEADS
    scale = 1.0 / (E ** 0.5)
    return {
        "wq_bd": (block_diag(*([params["wq"].T] * H)) * scale).astype(jnp.bfloat16),
        "wk_bd": block_diag(*([params["wk"].T] * H)).astype(jnp.bfloat16),
        "wv_bd": block_diag(*([params["wv"].T] * H)).astype(jnp.bfloat16),
        "w_fc_t": params["w_fc"].T.astype(jnp.bfloat16),
        "b_fc": params["b_fc"].reshape(1, E).astype(jnp.float32),
    }


def _largest_divisor(n, cap, step=1):
    best = None
    d = step
    while d <= min(n, cap):
        if n % d == 0:
            best = d
        d += step
    return best


def _choose_tiles(N, qlen):
    # Q tile: largest multiple-of-8 divisor of qlen up to 256 (bounds the attn
    # block on v7x's 64 MiB VMEM); otherwise fall back to the full q length.
    if qlen % 8 == 0:
        tq = _largest_divisor(qlen, 256, 8) or qlen
    else:
        tq = qlen
    n_qsteps = qlen // tq
    # Batch blocking: amortize per-step overhead when sequences are tiny, but
    # keep >= 2 grid steps so both v7x TensorCores get parallel work.
    tb = 1
    if qlen <= 128 and N > 1 and tq % 8 == 0:
        cap = 8 if n_qsteps >= 2 else max(1, N // 2)
        tb = _largest_divisor(N, min(N, cap)) or 1
    return tb, tq


def _vmem_limit_bytes(tb, tq, klen, vlen, E, H):
    f32, bf16 = 4, 2
    blocks = (tb * tq * E * f32            # q block
              + tb * klen * E * f32        # k block
              + tb * vlen * E * f32        # v block
              + tb * tq * E * f32          # out block
              + tb * tq * H * klen * f32   # attn block
              + 4 * E * E * bf16           # weights
              + E * f32)                   # bias
    limit = 2 * blocks + tb * tq * E * f32 + (4 << 20)   # dbl-buffer + scratch + headroom
    return int(min(max(limit, 32 << 20), 100 << 20))


@jax.jit
def multi_head_attention(values, keys, queries, prepped):
    """values/keys/queries: (N, L, embed_size) float32. prepped = prepare_params(params)."""
    N, vlen, E = values.shape
    klen = keys.shape[1]
    qlen = queries.shape[1]
    H = HEADS
    D = HEAD_DIM
    if klen != vlen:
        raise ValueError(f"key_len ({klen}) must equal value_len ({vlen})")

    TB, TQ = _choose_tiles(N, qlen)
    grid = (N // TB, qlen // TQ)

    kernel = functools.partial(_mha_kernel, heads=H, head_dim=D)

    flops = N * (2 * E * E * (qlen + klen + vlen)   # projections
                 + 4 * qlen * klen * E              # QK^T + PV
                 + 2 * qlen * E * E)                # fc_out
    bytes_accessed = (4 * N * E * (qlen + klen + vlen)     # q/k/v in (f32)
                      + 2 * 4 * E * E + 4 * E              # weights + bias
                      + 4 * N * qlen * E                   # out
                      + 4 * N * qlen * H * klen)           # attn slab

    out, attn_slab = pl.pallas_call(
        kernel,
        out_shape=(
            jax.ShapeDtypeStruct((N, qlen, E), jnp.float32),
            jax.ShapeDtypeStruct((N, qlen, H * klen), jnp.float32),
        ),
        grid_spec=pltpu.PrefetchScalarGridSpec(
            num_scalar_prefetch=0,
            grid=grid,
            in_specs=[
                pl.BlockSpec((TB, TQ, E), lambda n, qi: (n, qi, 0)),    # q
                pl.BlockSpec((TB, klen, E), lambda n, qi: (n, 0, 0)),   # k
                pl.BlockSpec((TB, vlen, E), lambda n, qi: (n, 0, 0)),   # v
                pl.BlockSpec((E, E), lambda n, qi: (0, 0)),   # wq (block-diag W.T * scale)
                pl.BlockSpec((E, E), lambda n, qi: (0, 0)),   # wk
                pl.BlockSpec((E, E), lambda n, qi: (0, 0)),   # wv
                pl.BlockSpec((E, E), lambda n, qi: (0, 0)),   # w_fc.T
                pl.BlockSpec((1, E), lambda n, qi: (0, 0)),   # b_fc
            ],
            out_specs=[
                pl.BlockSpec((TB, TQ, E), lambda n, qi: (n, qi, 0)),
                pl.BlockSpec((TB, TQ, H * klen), lambda n, qi: (n, qi, 0)),
            ],
            scratch_shapes=[pltpu.VMEM((TB * TQ, E), jnp.float32)],
        ),
        compiler_params=pltpu.CompilerParams(
            dimension_semantics=("parallel", "parallel"),
            vmem_limit_bytes=_vmem_limit_bytes(TB, TQ, klen, vlen, E, H)),
        cost_estimate=pl.CostEstimate(
            flops=flops,
            transcendentals=N * H * qlen * klen,
            bytes_accessed=bytes_accessed),
    )(queries, keys, values, prepped["wq_bd"], prepped["wk_bd"],
      prepped["wv_bd"], prepped["w_fc_t"], prepped["b_fc"])

    # Lane-dense slab -> PyTorch layout (N, H, Lq, Lk); cheap XLA reshape/transpose.
    attn = attn_slab.reshape(N, qlen, H, klen).transpose(0, 2, 1, 3)
    return out, attn


# Pure-JAX f32 reference (mirrors the PyTorch forward) for a correctness check.
def _reference(values, keys, queries, params):
    N, vlen, _ = values.shape
    klen, qlen = keys.shape[1], queries.shape[1]
    H, D, E = HEADS, HEAD_DIM, EMBED_SIZE
    v = values.reshape(N, vlen, H, D) @ params["wv"].T
    k = keys.reshape(N, klen, H, D) @ params["wk"].T
    q = queries.reshape(N, qlen, H, D) @ params["wq"].T
    energy = jnp.einsum("nqhd,nkhd->nhqk", q, k)
    attn = jax.nn.softmax(energy / (E ** 0.5), axis=3)
    out = jnp.einsum("nhql,nlhd->nqhd", attn, v).reshape(N, qlen, E)
    out = out @ params["w_fc"].T + params["b_fc"]
    return out, attn


if __name__ == "__main__":
    key = jax.random.PRNGKey(0)
    kq, kk, kv, kfc, kb, kx1, kx2, kx3 = jax.random.split(key, 8)

    D, E = HEAD_DIM, EMBED_SIZE
    params = {
        "wq": jax.random.normal(kq, (D, D), jnp.float32) * 0.1,
        "wk": jax.random.normal(kk, (D, D), jnp.float32) * 0.1,
        "wv": jax.random.normal(kv, (D, D), jnp.float32) * 0.1,
        "w_fc": jax.random.normal(kfc, (E, E), jnp.float32) * 0.05,
        "b_fc": jax.random.normal(kb, (E,), jnp.float32) * 0.01,
    }

    N, seq = 2, 8
    values = jax.random.normal(kx1, (N, seq, E), jnp.float32)
    keys = jax.random.normal(kx2, (N, seq, E), jnp.float32)
    queries = jax.random.normal(kx3, (N, seq, E), jnp.float32)

    # One-time weight prep (off the per-call critical path).
    prepped = jax.tree_util.tree_map(jax.block_until_ready, prepare_params(params))

    out, attn = multi_head_attention(values, keys, queries, prepped)
    out = jax.block_until_ready(out)
    attn = jax.block_until_ready(attn)

    ref_out, ref_attn = _reference(values, keys, queries, params)
    # bf16 MXU operands (f32 accumulation) -> tolerances relaxed vs. pure f32.
    assert out.shape == ref_out.shape and attn.shape == ref_attn.shape
    assert jnp.allclose(out, ref_out, atol=2e-2, rtol=2e-2)
    assert jnp.allclose(attn, ref_attn, atol=5e-3, rtol=1e-2)

    print("KERNEL_OK")
</pallas_src>

<mosaic_0001>
module attributes {stable_mosaic.version = 11 : i64} {
  func.func @_mha_kernel(%arg0: i32, %arg1: i32, %arg2: memref<1x8x256xf32, #tpu.memory_space<vmem>>, %arg3: memref<1x8x256xf32, #tpu.memory_space<vmem>>, %arg4: memref<1x8x256xf32, #tpu.memory_space<vmem>>, %arg5: memref<256x256xbf16, #tpu.memory_space<vmem>>, %arg6: memref<256x256xbf16, #tpu.memory_space<vmem>>, %arg7: memref<256x256xbf16, #tpu.memory_space<vmem>>, %arg8: memref<256x256xbf16, #tpu.memory_space<vmem>>, %arg9: memref<1x256xf32, #tpu.memory_space<vmem>>, %arg10: memref<1x8x256xf32, #tpu.memory_space<vmem>>, %arg11: memref<1x8x64xf32, #tpu.memory_space<vmem>>, %arg12: memref<8x256xf32, #tpu.memory_space<vmem>>) attributes {dimension_semantics = [#tpu.dimension_semantics<parallel>, #tpu.dimension_semantics<parallel>], iteration_bounds = array<i64: 2, 1>, scalar_prefetch = 0 : i64, scratch_operands = 1 : i64, tpu.core_type = #tpu.core_type<tc>, window_params = [{transform_indices = @transform_0, window_bounds = array<i64: 1, 8, 256>}, {transform_indices = @transform_1, window_bounds = array<i64: 1, 8, 256>}, {transform_indices = @transform_2, window_bounds = array<i64: 1, 8, 256>}, {pipeline_mode = #tpu.pipeline_mode<synchronous>, transform_indices = @transform_3, window_bounds = array<i64: 256, 256>}, {pipeline_mode = #tpu.pipeline_mode<synchronous>, transform_indices = @transform_4, window_bounds = array<i64: 256, 256>}, {pipeline_mode = #tpu.pipeline_mode<synchronous>, transform_indices = @transform_5, window_bounds = array<i64: 256, 256>}, {pipeline_mode = #tpu.pipeline_mode<synchronous>, transform_indices = @transform_6, window_bounds = array<i64: 256, 256>}, {pipeline_mode = #tpu.pipeline_mode<synchronous>, transform_indices = @transform_7, window_bounds = array<i64: 1, 256>}, {transform_indices = @transform_8, window_bounds = array<i64: 1, 8, 256>}, {transform_indices = @transform_9, window_bounds = array<i64: 1, 8, 64>}]} {
    %c0 = arith.constant 0 : index
    %c0_0 = arith.constant 0 : index
    %c0_1 = arith.constant 0 : index
    %0 = vector.load %arg2[%c0, %c0_0, %c0_1] : memref<1x8x256xf32, #tpu.memory_space<vmem>>, vector<1x8x256xf32>
    %1 = vector.shape_cast %0 : vector<1x8x256xf32> to vector<8x256xf32>
    %2 = arith.truncf %1 : vector<8x256xf32> to vector<8x256xbf16>
    %c0_2 = arith.constant 0 : index
    %c0_3 = arith.constant 0 : index
    %c0_4 = arith.constant 0 : index
    %3 = vector.load %arg3[%c0_2, %c0_3, %c0_4] : memref<1x8x256xf32, #tpu.memory_space<vmem>>, vector<1x8x256xf32>
    %4 = vector.shape_cast %3 : vector<1x8x256xf32> to vector<8x256xf32>
    %5 = arith.truncf %4 : vector<8x256xf32> to vector<8x256xbf16>
    %c0_5 = arith.constant 0 : index
    %c0_6 = arith.constant 0 : index
    %c0_7 = arith.constant 0 : index
    %6 = vector.load %arg4[%c0_5, %c0_6, %c0_7] : memref<1x8x256xf32, #tpu.memory_space<vmem>>, vector<1x8x256xf32>
    %7 = vector.shape_cast %6 : vector<1x8x256xf32> to vector<8x256xf32>
    %8 = arith.truncf %7 : vector<8x256xf32> to vector<8x256xbf16>
    %c0_8 = arith.constant 0 : index
    %c0_9 = arith.constant 0 : index
    %9 = vector.load %arg5[%c0_8, %c0_9] : memref<256x256xbf16, #tpu.memory_space<vmem>>, vector<256x256xbf16>
    %cst = arith.constant dense<0.000000e+00> : vector<8x256xf32>
    %10 = tpu.matmul %2, %9, %cst {dimension_numbers = #tpu.dot_dimension_numbers<[1], [0], [0], [1], [0, 0, 1, 1], [], []>} : vector<8x256xbf16>, vector<256x256xbf16>, vector<8x256xf32> -> vector<8x256xf32>
    %c0_10 = arith.constant 0 : index
    %c0_11 = arith.constant 0 : index
    %11 = vector.load %arg6[%c0_10, %c0_11] : memref<256x256xbf16, #tpu.memory_space<vmem>>, vector<256x256xbf16>
    %cst_12 = arith.constant dense<0.000000e+00> : vector<8x256xf32>
    %12 = tpu.matmul %5, %11, %cst_12 {dimension_numbers = #tpu.dot_dimension_numbers<[1], [0], [0], [1], [0, 0, 1, 1], [], []>} : vector<8x256xbf16>, vector<256x256xbf16>, vector<8x256xf32> -> vector<8x256xf32>
    %c0_13 = arith.constant 0 : index
    %c0_14 = arith.constant 0 : index
    %13 = vector.load %arg7[%c0_13, %c0_14] : memref<256x256xbf16, #tpu.memory_space<vmem>>, vector<256x256xbf16>
    %cst_15 = arith.constant dense<0.000000e+00> : vector<8x256xf32>
    %14 = tpu.matmul %8, %13, %cst_15 {dimension_numbers = #tpu.dot_dimension_numbers<[1], [0], [0], [1], [0, 0, 1, 1], [], []>} : vector<8x256xbf16>, vector<256x256xbf16>, vector<8x256xf32> -> vector<8x256xf32>
    %15 = arith.truncf %10 : vector<8x256xf32> to vector<8x256xbf16>
    %16 = arith.truncf %12 : vector<8x256xf32> to vector<8x256xbf16>
    %17 = arith.truncf %14 : vector<8x256xf32> to vector<8x256xbf16>
    %18 = vector.extract_strided_slice %15 {offsets = [0, 0], sizes = [8, 32], strides = [1, 1]} : vector<8x256xbf16> to vector<8x32xbf16>
    %19 = vector.extract_strided_slice %16 {offsets = [0, 0], sizes = [8, 32], strides = [1, 1]} : vector<8x256xbf16> to vector<8x32xbf16>
    %cst_16 = arith.constant dense<0.000000e+00> : vector<8x8xf32>
    %20 = tpu.matmul %18, %19, %cst_16 {dimension_numbers = #tpu.dot_dimension_numbers<[1], [1], [0], [0], [0, 0, 1, 0], [], []>} : vector<8x32xbf16>, vector<8x32xbf16>, vector<8x8xf32> -> vector<8x8xf32>
    %cst_17 = arith.constant dense<0xFF800000> : vector<8xf32>
    %21 = vector.multi_reduction <maximumf>, %20, %cst_17 [1] : vector<8x8xf32> to vector<8xf32>
    %22 = vector.shape_cast %21 : vector<8xf32> to vector<8x1xf32>
    %23 = vector.broadcast %22 : vector<8x1xf32> to vector<8x8xf32>
    %24 = arith.subf %20, %23 : vector<8x8xf32>
    %25 = math.exp %24 : vector<8x8xf32>
    %cst_18 = arith.constant dense<0.000000e+00> : vector<8xf32>
    %26 = vector.multi_reduction <add>, %25, %cst_18 [1] : vector<8x8xf32> to vector<8xf32>
    %27 = vector.shape_cast %26 : vector<8xf32> to vector<8x1xf32>
    %28 = tpu.reciprocal %27 : vector<8x1xf32> -> vector<8x1xf32>
    %29 = vector.broadcast %28 : vector<8x1xf32> to vector<8x8xf32>
    %30 = arith.mulf %25, %29 : vector<8x8xf32>
    %c0_19 = arith.constant 0 : index
    %c0_20 = arith.constant 0 : index
    %c0_21 = arith.constant 0 : index
    %31 = vector.load %arg11[%c0_19, %c0_20, %c0_21] : memref<1x8x64xf32, #tpu.memory_space<vmem>>, vector<1x8x8xf32>
    %32 = vector.shape_cast %31 : vector<1x8x8xf32> to vector<8x8xf32>
    %33 = vector.shape_cast %30 : vector<8x8xf32> to vector<1x8x8xf32>
    tpu.vector_store %arg11[%c0_19, %c0_20, %c0_21], %33 {strides = array<i32>} : memref<1x8x64xf32, #tpu.memory_space<vmem>>, vector<1x8x8xf32>,
    %34 = arith.truncf %30 : vector<8x8xf32> to vector<8x8xbf16>
    %35 = vector.extract_strided_slice %17 {offsets = [0, 0], sizes = [8, 32], strides = [1, 1]} : vector<8x256xbf16> to vector<8x32xbf16>
    %cst_22 = arith.constant dense<0.000000e+00> : vector<8x32xf32>
    %36 = tpu.matmul %34, %35, %cst_22 {dimension_numbers = #tpu.dot_dimension_numbers<[1], [0], [0], [1], [0, 0, 1, 1], [], []>} : vector<8x8xbf16>, vector<8x32xbf16>, vector<8x32xf32> -> vector<8x32xf32>
    %c0_23 = arith.constant 0 : index
    %c0_24 = arith.constant 0 : index
    %37 = vector.load %arg12[%c0_23, %c0_24] : memref<8x256xf32, #tpu.memory_space<vmem>>, vector<8x32xf32>
    tpu.vector_store %arg12[%c0_23, %c0_24], %36 {strides = array<i32>} : memref<8x256xf32, #tpu.memory_space<vmem>>, vector<8x32xf32>,
    %38 = vector.extract_strided_slice %15 {offsets = [0, 32], sizes = [8, 32], strides = [1, 1]} : vector<8x256xbf16> to vector<8x32xbf16>
    %39 = vector.extract_strided_slice %16 {offsets = [0, 32], sizes = [8, 32], strides = [1, 1]} : vector<8x256xbf16> to vector<8x32xbf16>
    %cst_25 = arith.constant dense<0.000000e+00> : vector<8x8xf32>
    %40 = tpu.matmul %38, %39, %cst_25 {dimension_numbers = #tpu.dot_dimension_numbers<[1], [1], [0], [0], [0, 0, 1, 0], [], []>} : vector<8x32xbf16>, vector<8x32xbf16>, vector<8x8xf32> -> vector<8x8xf32>
    %cst_26 = arith.constant dense<0xFF800000> : vector<8xf32>
    %41 = vector.multi_reduction <maximumf>, %40, %cst_26 [1] : vector<8x8xf32> to vector<8xf32>
    %42 = vector.shape_cast %41 : vector<8xf32> to vector<8x1xf32>
    %43 = vector.broadcast %42 : vector<8x1xf32> to vector<8x8xf32>
    %44 = arith.subf %40, %43 : vector<8x8xf32>
    %45 = math.exp %44 : vector<8x8xf32>
    %cst_27 = arith.constant dense<0.000000e+00> : vector<8xf32>
    %46 = vector.multi_reduction <add>, %45, %cst_27 [1] : vector<8x8xf32> to vector<8xf32>
    %47 = vector.shape_cast %46 : vector<8xf32> to vector<8x1xf32>
    %48 = tpu.reciprocal %47 : vector<8x1xf32> -> vector<8x1xf32>
    %49 = vector.broadcast %48 : vector<8x1xf32> to vector<8x8xf32>
    %50 = arith.mulf %45, %49 : vector<8x8xf32>
    %c0_28 = arith.constant 0 : index
    %c0_29 = arith.constant 0 : index
    %c8 = arith.constant 8 : index
    %51 = vector.load %arg11[%c0_28, %c0_29, %c8] : memref<1x8x64xf32, #tpu.memory_space<vmem>>, vector<1x8x8xf32>
    %52 = vector.shape_cast %51 : vector<1x8x8xf32> to vector<8x8xf32>
    %53 = vector.shape_cast %50 : vector<8x8xf32> to vector<1x8x8xf32>
    tpu.vector_store %arg11[%c0_28, %c0_29, %c8], %53 {strides = array<i32>} : memref<1x8x64xf32, #tpu.memory_space<vmem>>, vector<1x8x8xf32>,
    %54 = arith.truncf %50 : vector<8x8xf32> to vector<8x8xbf16>
    %55 = vector.extract_strided_slice %17 {offsets = [0, 32], sizes = [8, 32], strides = [1, 1]} : vector<8x256xbf16> to vector<8x32xbf16>
    %cst_30 = arith.constant dense<0.000000e+00> : vector<8x32xf32>
    %56 = tpu.matmul %54, %55, %cst_30 {dimension_numbers = #tpu.dot_dimension_numbers<[1], [0], [0], [1], [0, 0, 1, 1], [], []>} : vector<8x8xbf16>, vector<8x32xbf16>, vector<8x32xf32> -> vector<8x32xf32>
    %c0_31 = arith.constant 0 : index
    %c32 = arith.constant 32 : index
    %57 = vector.load %arg12[%c0_31, %c32] : memref<8x256xf32, #tpu.memory_space<vmem>>, vector<8x32xf32>
    tpu.vector_store %arg12[%c0_31, %c32], %56 {strides = array<i32>} : memref<8x256xf32, #tpu.memory_space<vmem>>, vector<8x32xf32>,
    %58 = vector.extract_strided_slice %15 {offsets = [0, 64], sizes = [8, 32], strides = [1, 1]} : vector<8x256xbf16> to vector<8x32xbf16>
    %59 = vector.extract_strided_slice %16 {offsets = [0, 64], sizes = [8, 32], strides = [1, 1]} : vector<8x256xbf16> to vector<8x32xbf16>
    %cst_32 = arith.constant dense<0.000000e+00> : vector<8x8xf32>
    %60 = tpu.matmul %58, %59, %cst_32 {dimension_numbers = #tpu.dot_dimension_numbers<[1], [1], [0], [0], [0, 0, 1, 0], [], []>} : vector<8x32xbf16>, vector<8x32xbf16>, vector<8x8xf32> -> vector<8x8xf32>
    %cst_33 = arith.constant dense<0xFF800000> : vector<8xf32>
    %61 = vector.multi_reduction <maximumf>, %60, %cst_33 [1] : vector<8x8xf32> to vector<8xf32>
    %62 = vector.shape_cast %61 : vector<8xf32> to vector<8x1xf32>
    %63 = vector.broadcast %62 : vector<8x1xf32> to vector<8x8xf32>
    %64 = arith.subf %60, %63 : vector<8x8xf32>
    %65 = math.exp %64 : vector<8x8xf32>
    %cst_34 = arith.constant dense<0.000000e+00> : vector<8xf32>
    %66 = vector.multi_reduction <add>, %65, %cst_34 [1] : vector<8x8xf32> to vector<8xf32>
    %67 = vector.shape_cast %66 : vector<8xf32> to vector<8x1xf32>
    %68 = tpu.reciprocal %67 : vector<8x1xf32> -> vector<8x1xf32>
    %69 = vector.broadcast %68 : vector<8x1xf32> to vector<8x8xf32>
    %70 = arith.mulf %65, %69 : vector<8x8xf32>
    %c0_35 = arith.constant 0 : index
    %c0_36 = arith.constant 0 : index
    %c16 = arith.constant 16 : index
    %71 = vector.load %arg11[%c0_35, %c0_36, %c16] : memref<1x8x64xf32, #tpu.memory_space<vmem>>, vector<1x8x8xf32>
    %72 = vector.shape_cast %71 : vector<1x8x8xf32> to vector<8x8xf32>
    %73 = vector.shape_cast %70 : vector<8x8xf32> to vector<1x8x8xf32>
    tpu.vector_store %arg11[%c0_35, %c0_36, %c16], %73 {strides = array<i32>} : memref<1x8x64xf32, #tpu.memory_space<vmem>>, vector<1x8x8xf32>,
    %74 = arith.truncf %70 : vector<8x8xf32> to vector<8x8xbf16>
    %75 = vector.extract_strided_slice %17 {offsets = [0, 64], sizes = [8, 32], strides = [1, 1]} : vector<8x256xbf16> to vector<8x32xbf16>
    %cst_37 = arith.constant dense<0.000000e+00> : vector<8x32xf32>
    %76 = tpu.matmul %74, %75, %cst_37 {dimension_numbers = #tpu.dot_dimension_numbers<[1], [0], [0], [1], [0, 0, 1, 1], [], []>} : vector<8x8xbf16>, vector<8x32xbf16>, vector<8x32xf32> -> vector<8x32xf32>
    %c0_38 = arith.constant 0 : index
    %c64 = arith.constant 64 : index
    %77 = vector.load %arg12[%c0_38, %c64] : memref<8x256xf32, #tpu.memory_space<vmem>>, vector<8x32xf32>
    tpu.vector_store %arg12[%c0_38, %c64], %76 {strides = array<i32>} : memref<8x256xf32, #tpu.memory_space<vmem>>, vector<8x32xf32>,
    %78 = vector.extract_strided_slice %15 {offsets = [0, 96], sizes = [8, 32], strides = [1, 1]} : vector<8x256xbf16> to vector<8x32xbf16>
    %79 = vector.extract_strided_slice %16 {offsets = [0, 96], sizes = [8, 32], strides = [1, 1]} : vector<8x256xbf16> to vector<8x32xbf16>
    %cst_39 = arith.constant dense<0.000000e+00> : vector<8x8xf32>
    %80 = tpu.matmul %78, %79, %cst_39 {dimension_numbers = #tpu.dot_dimension_numbers<[1], [1], [0], [0], [0, 0, 1, 0], [], []>} : vector<8x32xbf16>, vector<8x32xbf16>, vector<8x8xf32> -> vector<8x8xf32>
    %cst_40 = arith.constant dense<0xFF800000> : vector<8xf32>
    %81 = vector.multi_reduction <maximumf>, %80, %cst_40 [1] : vector<8x8xf32> to vector<8xf32>
    %82 = vector.shape_cast %81 : vector<8xf32> to vector<8x1xf32>
    %83 = vector.broadcast %82 : vector<8x1xf32> to vector<8x8xf32>
    %84 = arith.subf %80, %83 : vector<8x8xf32>
    %85 = math.exp %84 : vector<8x8xf32>
    %cst_41 = arith.constant dense<0.000000e+00> : vector<8xf32>
    %86 = vector.multi_reduction <add>, %85, %cst_41 [1] : vector<8x8xf32> to vector<8xf32>
    %87 = vector.shape_cast %86 : vector<8xf32> to vector<8x1xf32>
    %88 = tpu.reciprocal %87 : vector<8x1xf32> -> vector<8x1xf32>
    %89 = vector.broadcast %88 : vector<8x1xf32> to vector<8x8xf32>
    %90 = arith.mulf %85, %89 : vector<8x8xf32>
    %c0_42 = arith.constant 0 : index
    %c0_43 = arith.constant 0 : index
    %c24 = arith.constant 24 : index
    %91 = vector.load %arg11[%c0_42, %c0_43, %c24] : memref<1x8x64xf32, #tpu.memory_space<vmem>>, vector<1x8x8xf32>
    %92 = vector.shape_cast %91 : vector<1x8x8xf32> to vector<8x8xf32>
    %93 = vector.shape_cast %90 : vector<8x8xf32> to vector<1x8x8xf32>
    tpu.vector_store %arg11[%c0_42, %c0_43, %c24], %93 {strides = array<i32>} : memref<1x8x64xf32, #tpu.memory_space<vmem>>, vector<1x8x8xf32>,
    %94 = arith.truncf %90 : vector<8x8xf32> to vector<8x8xbf16>
    %95 = vector.extract_strided_slice %17 {offsets = [0, 96], sizes = [8, 32], strides = [1, 1]} : vector<8x256xbf16> to vector<8x32xbf16>
    %cst_44 = arith.constant dense<0.000000e+00> : vector<8x32xf32>
    %96 = tpu.matmul %94, %95, %cst_44 {dimension_numbers = #tpu.dot_dimension_numbers<[1], [0], [0], [1], [0, 0, 1, 1], [], []>} : vector<8x8xbf16>, vector<8x32xbf16>, vector<8x32xf32> -> vector<8x32xf32>
    %c0_45 = arith.constant 0 : index
    %c96 = arith.constant 96 : index
    %97 = vector.load %arg12[%c0_45, %c96] : memref<8x256xf32, #tpu.memory_space<vmem>>, vector<8x32xf32>
    tpu.vector_store %arg12[%c0_45, %c96], %96 {strides = array<i32>} : memref<8x256xf32, #tpu.memory_space<vmem>>, vector<8x32xf32>,
    %98 = vector.extract_strided_slice %15 {offsets = [0, 128], sizes = [8, 32], strides = [1, 1]} : vector<8x256xbf16> to vector<8x32xbf16>
    %99 = vector.extract_strided_slice %16 {offsets = [0, 128], sizes = [8, 32], strides = [1, 1]} : vector<8x256xbf16> to vector<8x32xbf16>
    %cst_46 = arith.constant dense<0.000000e+00> : vector<8x8xf32>
    %100 = tpu.matmul %98, %99, %cst_46 {dimension_numbers = #tpu.dot_dimension_numbers<[1], [1], [0], [0], [0, 0, 1, 0], [], []>} : vector<8x32xbf16>, vector<8x32xbf16>, vector<8x8xf32> -> vector<8x8xf32>
    %cst_47 = arith.constant dense<0xFF800000> : vector<8xf32>
    %101 = vector.multi_reduction <maximumf>, %100, %cst_47 [1] : vector<8x8xf32> to vector<8xf32>
    %102 = vector.shape_cast %101 : vector<8xf32> to vector<8x1xf32>
    %103 = vector.broadcast %102 : vector<8x1xf32> to vector<8x8xf32>
    %104 = arith.subf %100, %103 : vector<8x8xf32>
    %105 = math.exp %104 : vector<8x8xf32>
    %cst_48 = arith.constant dense<0.000000e+00> : vector<8xf32>
    %106 = vector.multi_reduction <add>, %105, %cst_48 [1] : vector<8x8xf32> to vector<8xf32>
    %107 = vector.shape_cast %106 : vector<8xf32> to vector<8x1xf32>
    %108 = tpu.reciprocal %107 : vector<8x1xf32> -> vector<8x1xf32>
    %109 = vector.broadcast %108 : vector<8x1xf32> to vector<8x8xf32>
    %110 = arith.mulf %105, %109 : vector<8x8xf32>
    %c0_49 = arith.constant 0 : index
    %c0_50 = arith.constant 0 : index
    %c32_51 = arith.constant 32 : index
    %111 = vector.load %arg11[%c0_49, %c0_50, %c32_51] : memref<1x8x64xf32, #tpu.memory_space<vmem>>, vector<1x8x8xf32>
    %112 = vector.shape_cast %111 : vector<1x8x8xf32> to vector<8x8xf32>
    %113 = vector.shape_cast %110 : vector<8x8xf32> to vector<1x8x8xf32>
    tpu.vector_store %arg11[%c0_49, %c0_50, %c32_51], %113 {strides = array<i32>} : memref<1x8x64xf32, #tpu.memory_space<vmem>>, vector<1x8x8xf32>,
    %114 = arith.truncf %110 : vector<8x8xf32> to vector<8x8xbf16>
    %115 = vector.extract_strided_slice %17 {offsets = [0, 128], sizes = [8, 32], strides = [1, 1]} : vector<8x256xbf16> to vector<8x32xbf16>
    %cst_52 = arith.constant dense<0.000000e+00> : vector<8x32xf32>
    %116 = tpu.matmul %114, %115, %cst_52 {dimension_numbers = #tpu.dot_dimension_numbers<[1], [0], [0], [1], [0, 0, 1, 1], [], []>} : vector<8x8xbf16>, vector<8x32xbf16>, vector<8x32xf32> -> vector<8x32xf32>
    %c0_53 = arith.constant 0 : index
    %c128 = arith.constant 128 : index
    %117 = vector.load %arg12[%c0_53, %c128] : memref<8x256xf32, #tpu.memory_space<vmem>>, vector<8x32xf32>
    tpu.vector_store %arg12[%c0_53, %c128], %116 {strides = array<i32>} : memref<8x256xf32, #tpu.memory_space<vmem>>, vector<8x32xf32>,
    %118 = vector.extract_strided_slice %15 {offsets = [0, 160], sizes = [8, 32], strides = [1, 1]} : vector<8x256xbf16> to vector<8x32xbf16>
    %119 = vector.extract_strided_slice %16 {offsets = [0, 160], sizes = [8, 32], strides = [1, 1]} : vector<8x256xbf16> to vector<8x32xbf16>
    %cst_54 = arith.constant dense<0.000000e+00> : vector<8x8xf32>
    %120 = tpu.matmul %118, %119, %cst_54 {dimension_numbers = #tpu.dot_dimension_numbers<[1], [1], [0], [0], [0, 0, 1, 0], [], []>} : vector<8x32xbf16>, vector<8x32xbf16>, vector<8x8xf32> -> vector<8x8xf32>
    %cst_55 = arith.constant dense<0xFF800000> : vector<8xf32>
    %121 = vector.multi_reduction <maximumf>, %120, %cst_55 [1] : vector<8x8xf32> to vector<8xf32>
    %122 = vector.shape_cast %121 : vector<8xf32> to vector<8x1xf32>
    %123 = vector.broadcast %122 : vector<8x1xf32> to vector<8x8xf32>
    %124 = arith.subf %120, %123 : vector<8x8xf32>
    %125 = math.exp %124 : vector<8x8xf32>
    %cst_56 = arith.constant dense<0.000000e+00> : vector<8xf32>
    %126 = vector.multi_reduction <add>, %125, %cst_56 [1] : vector<8x8xf32> to vector<8xf32>
    %127 = vector.shape_cast %126 : vector<8xf32> to vector<8x1xf32>
    %128 = tpu.reciprocal %127 : vector<8x1xf32> -> vector<8x1xf32>
    %129 = vector.broadcast %128 : vector<8x1xf32> to vector<8x8xf32>
    %130 = arith.mulf %125, %129 : vector<8x8xf32>
    %c0_57 = arith.constant 0 : index
    %c0_58 = arith.constant 0 : index
    %c40 = arith.constant 40 : index
    %131 = vector.load %arg11[%c0_57, %c0_58, %c40] : memref<1x8x64xf32, #tpu.memory_space<vmem>>, vector<1x8x8xf32>
    %132 = vector.shape_cast %131 : vector<1x8x8xf32> to vector<8x8xf32>
    %133 = vector.shape_cast %130 : vector<8x8xf32> to vector<1x8x8xf32>
    tpu.vector_store %arg11[%c0_57, %c0_58, %c40], %133 {strides = array<i32>} : memref<1x8x64xf32, #tpu.memory_space<vmem>>, vector<1x8x8xf32>,
    %134 = arith.truncf %130 : vector<8x8xf32> to vector<8x8xbf16>
    %135 = vector.extract_strided_slice %17 {offsets = [0, 160], sizes = [8, 32], strides = [1, 1]} : vector<8x256xbf16> to vector<8x32xbf16>
    %cst_59 = arith.constant dense<0.000000e+00> : vector<8x32xf32>
    %136 = tpu.matmul %134, %135, %cst_59 {dimension_numbers = #tpu.dot_dimension_numbers<[1], [0], [0], [1], [0, 0, 1, 1], [], []>} : vector<8x8xbf16>, vector<8x32xbf16>, vector<8x32xf32> -> vector<8x32xf32>
    %c0_60 = arith.constant 0 : index
    %c160 = arith.constant 160 : index
    %137 = vector.load %arg12[%c0_60, %c160] : memref<8x256xf32, #tpu.memory_space<vmem>>, vector<8x32xf32>
    tpu.vector_store %arg12[%c0_60, %c160], %136 {strides = array<i32>} : memref<8x256xf32, #tpu.memory_space<vmem>>, vector<8x32xf32>,
    %138 = vector.extract_strided_slice %15 {offsets = [0, 192], sizes = [8, 32], strides = [1, 1]} : vector<8x256xbf16> to vector<8x32xbf16>
    %139 = vector.extract_strided_slice %16 {offsets = [0, 192], sizes = [8, 32], strides = [1, 1]} : vector<8x256xbf16> to vector<8x32xbf16>
    %cst_61 = arith.constant dense<0.000000e+00> : vector<8x8xf32>
    %140 = tpu.matmul %138, %139, %cst_61 {dimension_numbers = #tpu.dot_dimension_numbers<[1], [1], [0], [0], [0, 0, 1, 0], [], []>} : vector<8x32xbf16>, vector<8x32xbf16>, vector<8x8xf32> -> vector<8x8xf32>
    %cst_62 = arith.constant dense<0xFF800000> : vector<8xf32>
    %141 = vector.multi_reduction <maximumf>, %140, %cst_62 [1] : vector<8x8xf32> to vector<8xf32>
    %142 = vector.shape_cast %141 : vector<8xf32> to vector<8x1xf32>
    %143 = vector.broadcast %142 : vector<8x1xf32> to vector<8x8xf32>
    %144 = arith.subf %140, %143 : vector<8x8xf32>
    %145 = math.exp %144 : vector<8x8xf32>
    %cst_63 = arith.constant dense<0.000000e+00> : vector<8xf32>
    %146 = vector.multi_reduction <add>, %145, %cst_63 [1] : vector<8x8xf32> to vector<8xf32>
    %147 = vector.shape_cast %146 : vector<8xf32> to vector<8x1xf32>
    %148 = tpu.reciprocal %147 : vector<8x1xf32> -> vector<8x1xf32>
    %149 = vector.broadcast %148 : vector<8x1xf32> to vector<8x8xf32>
    %150 = arith.mulf %145, %149 : vector<8x8xf32>
    %c0_64 = arith.constant 0 : index
    %c0_65 = arith.constant 0 : index
    %c48 = arith.constant 48 : index
    %151 = vector.load %arg11[%c0_64, %c0_65, %c48] : memref<1x8x64xf32, #tpu.memory_space<vmem>>, vector<1x8x8xf32>
    %152 = vector.shape_cast %151 : vector<1x8x8xf32> to vector<8x8xf32>
    %153 = vector.shape_cast %150 : vector<8x8xf32> to vector<1x8x8xf32>
    tpu.vector_store %arg11[%c0_64, %c0_65, %c48], %153 {strides = array<i32>} : memref<1x8x64xf32, #tpu.memory_space<vmem>>, vector<1x8x8xf32>,
    %154 = arith.truncf %150 : vector<8x8xf32> to vector<8x8xbf16>
    %155 = vector.extract_strided_slice %17 {offsets = [0, 192], sizes = [8, 32], strides = [1, 1]} : vector<8x256xbf16> to vector<8x32xbf16>
    %cst_66 = arith.constant dense<0.000000e+00> : vector<8x32xf32>
    %156 = tpu.matmul %154, %155, %cst_66 {dimension_numbers = #tpu.dot_dimension_numbers<[1], [0], [0], [1], [0, 0, 1, 1], [], []>} : vector<8x8xbf16>, vector<8x32xbf16>, vector<8x32xf32> -> vector<8x32xf32>
    %c0_67 = arith.constant 0 : index
    %c192 = arith.constant 192 : index
    %157 = vector.load %arg12[%c0_67, %c192] : memref<8x256xf32, #tpu.memory_space<vmem>>, vector<8x32xf32>
    tpu.vector_store %arg12[%c0_67, %c192], %156 {strides = array<i32>} : memref<8x256xf32, #tpu.memory_space<vmem>>, vector<8x32xf32>,
    %158 = vector.extract_strided_slice %15 {offsets = [0, 224], sizes = [8, 32], strides = [1, 1]} : vector<8x256xbf16> to vector<8x32xbf16>
    %159 = vector.extract_strided_slice %16 {offsets = [0, 224], sizes = [8, 32], strides = [1, 1]} : vector<8x256xbf16> to vector<8x32xbf16>
    %cst_68 = arith.constant dense<0.000000e+00> : vector<8x8xf32>
    %160 = tpu.matmul %158, %159, %cst_68 {dimension_numbers = #tpu.dot_dimension_numbers<[1], [1], [0], [0], [0, 0, 1, 0], [], []>} : vector<8x32xbf16>, vector<8x32xbf16>, vector<8x8xf32> -> vector<8x8xf32>
    %cst_69 = arith.constant dense<0xFF800000> : vector<8xf32>
    %161 = vector.multi_reduction <maximumf>, %160, %cst_69 [1] : vector<8x8xf32> to vector<8xf32>
    %162 = vector.shape_cast %161 : vector<8xf32> to vector<8x1xf32>
    %163 = vector.broadcast %162 : vector<8x1xf32> to vector<8x8xf32>
    %164 = arith.subf %160, %163 : vector<8x8xf32>
    %165 = math.exp %164 : vector<8x8xf32>
    %cst_70 = arith.constant dense<0.000000e+00> : vector<8xf32>
    %166 = vector.multi_reduction <add>, %165, %cst_70 [1] : vector<8x8xf32> to vector<8xf32>
    %167 = vector.shape_cast %166 : vector<8xf32> to vector<8x1xf32>
    %168 = tpu.reciprocal %167 : vector<8x1xf32> -> vector<8x1xf32>
    %169 = vector.broadcast %168 : vector<8x1xf32> to vector<8x8xf32>
    %170 = arith.mulf %165, %169 : vector<8x8xf32>
    %c0_71 = arith.constant 0 : index
    %c0_72 = arith.constant 0 : index
    %c56 = arith.constant 56 : index
    %171 = vector.load %arg11[%c0_71, %c0_72, %c56] : memref<1x8x64xf32, #tpu.memory_space<vmem>>, vector<1x8x8xf32>
    %172 = vector.shape_cast %171 : vector<1x8x8xf32> to vector<8x8xf32>
    %173 = vector.shape_cast %170 : vector<8x8xf32> to vector<1x8x8xf32>
    tpu.vector_store %arg11[%c0_71, %c0_72, %c56], %173 {strides = array<i32>} : memref<1x8x64xf32, #tpu.memory_space<vmem>>, vector<1x8x8xf32>,
    %174 = arith.truncf %170 : vector<8x8xf32> to vector<8x8xbf16>
    %175 = vector.extract_strided_slice %17 {offsets = [0, 224], sizes = [8, 32], strides = [1, 1]} : vector<8x256xbf16> to vector<8x32xbf16>
    %cst_73 = arith.constant dense<0.000000e+00> : vector<8x32xf32>
    %176 = tpu.matmul %174, %175, %cst_73 {dimension_numbers = #tpu.dot_dimension_numbers<[1], [0], [0], [1], [0, 0, 1, 1], [], []>} : vector<8x8xbf16>, vector<8x32xbf16>, vector<8x32xf32> -> vector<8x32xf32>
    %c0_74 = arith.constant 0 : index
    %c224 = arith.constant 224 : index
    %177 = vector.load %arg12[%c0_74, %c224] : memref<8x256xf32, #tpu.memory_space<vmem>>, vector<8x32xf32>
    tpu.vector_store %arg12[%c0_74, %c224], %176 {strides = array<i32>} : memref<8x256xf32, #tpu.memory_space<vmem>>, vector<8x32xf32>,
    %c0_75 = arith.constant 0 : index
    %c0_76 = arith.constant 0 : index
    %178 = vector.load %arg12[%c0_75, %c0_76] : memref<8x256xf32, #tpu.memory_space<vmem>>, vector<8x256xf32>
    %179 = arith.truncf %178 : vector<8x256xf32> to vector<8x256xbf16>
    %c0_77 = arith.constant 0 : index
    %c0_78 = arith.constant 0 : index
    %180 = vector.load %arg8[%c0_77, %c0_78] : memref<256x256xbf16, #tpu.memory_space<vmem>>, vector<256x256xbf16>
    %cst_79 = arith.constant dense<0.000000e+00> : vector<8x256xf32>
    %181 = tpu.matmul %179, %180, %cst_79 {dimension_numbers = #tpu.dot_dimension_numbers<[1], [0], [0], [1], [0, 0, 1, 1], [], []>} : vector<8x256xbf16>, vector<256x256xbf16>, vector<8x256xf32> -> vector<8x256xf32>
    %c0_80 = arith.constant 0 : index
    %c0_81 = arith.constant 0 : index
    %182 = vector.load %arg9[%c0_80, %c0_81] : memref<1x256xf32, #tpu.memory_space<vmem>>, vector<1x256xf32>
    %183 = vector.broadcast %182 : vector<1x256xf32> to vector<8x256xf32>
    %184 = arith.addf %181, %183 : vector<8x256xf32>
    %185 = vector.shape_cast %184 : vector<8x256xf32> to vector<1x8x256xf32>
    %c0_82 = arith.constant 0 : index
    %c0_83 = arith.constant 0 : index
    %c0_84 = arith.constant 0 : index
    %186 = vector.load %arg10[%c0_82, %c0_83, %c0_84] : memref<1x8x256xf32, #tpu.memory_space<vmem>>, vector<1x8x256xf32>
    tpu.vector_store %arg10[%c0_82, %c0_83, %c0_84], %185 {strides = array<i32>} : memref<1x8x256xf32, #tpu.memory_space<vmem>>, vector<1x8x256xf32>,
    return
  }
  func.func @transform_0(%arg0: i32, %arg1: i32) -> (i32, i32, i32) {
    %c0_i32 = arith.constant 0 : i32
    %c0_i32_0 = arith.constant 0 : i32
    return %arg0, %arg1, %c0_i32 : i32, i32, i32
  }
  func.func @transform_1(%arg0: i32, %arg1: i32) -> (i32, i32, i32) {
    %c0_i32 = arith.constant 0 : i32
    %c0_i32_0 = arith.constant 0 : i32
    %c0_i32_1 = arith.constant 0 : i32
    return %arg0, %c0_i32, %c0_i32_0 : i32, i32, i32
  }
  func.func @transform_2(%arg0: i32, %arg1: i32) -> (i32, i32, i32) {
    %c0_i32 = arith.constant 0 : i32
    %c0_i32_0 = arith.constant 0 : i32
    %c0_i32_1 = arith.constant 0 : i32
    return %arg0, %c0_i32, %c0_i32_0 : i32, i32, i32
  }
  func.func @transform_3(%arg0: i32, %arg1: i32) -> (i32, i32) {
    %c0_i32 = arith.constant 0 : i32
    %c0_i32_0 = arith.constant 0 : i32
    %c0_i32_1 = arith.constant 0 : i32
    return %c0_i32, %c0_i32_0 : i32, i32
  }
  func.func @transform_4(%arg0: i32, %arg1: i32) -> (i32, i32) {
    %c0_i32 = arith.constant 0 : i32
    %c0_i32_0 = arith.constant 0 : i32
    %c0_i32_1 = arith.constant 0 : i32
    return %c0_i32, %c0_i32_0 : i32, i32
  }
  func.func @transform_5(%arg0: i32, %arg1: i32) -> (i32, i32) {
    %c0_i32 = arith.constant 0 : i32
    %c0_i32_0 = arith.constant 0 : i32
    %c0_i32_1 = arith.constant 0 : i32
    return %c0_i32, %c0_i32_0 : i32, i32
  }
  func.func @transform_6(%arg0: i32, %arg1: i32) -> (i32, i32) {
    %c0_i32 = arith.constant 0 : i32
    %c0_i32_0 = arith.constant 0 : i32
    %c0_i32_1 = arith.constant 0 : i32
    return %c0_i32, %c0_i32_0 : i32, i32
  }
  func.func @transform_7(%arg0: i32, %arg1: i32) -> (i32, i32) {
    %c0_i32 = arith.constant 0 : i32
    %c0_i32_0 = arith.constant 0 : i32
    %c0_i32_1 = arith.constant 0 : i32
    return %c0_i32, %c0_i32_0 : i32, i32
  }
  func.func @transform_8(%arg0: i32, %arg1: i32) -> (i32, i32, i32) {
    %c0_i32 = arith.constant 0 : i32
    %c0_i32_0 = arith.constant 0 : i32
    return %arg0, %arg1, %c0_i32 : i32, i32, i32
  }
  func.func @transform_9(%arg0: i32, %arg1: i32) -> (i32, i32, i32) {
    %c0_i32 = arith.constant 0 : i32
    %c0_i32_0 = arith.constant 0 : i32
    return %arg0, %arg1, %c0_i32 : i32, i32, i32
  }
}

</mosaic_0001>

<llo_original>
// kernel: multi_head_attention.1
$region0: #{multi_head_attention.1}
  #allocation0 [shape = 'u32[]', space=smem, size = 0x4, offset = 0x4, fixed_abs, tag = 'smem constant byte address 0x4 - core index']
  #allocation1 [shape = 'u32[144,128]{1,0:T(1,128)}', space=vmem, size = 0x12000, scoped, tag = 'internal scratch']
  #allocation2 [shape = 'f32[8,256]{1,0:T(8,128)}', space=vmem, size = 0x2000, scoped, tag = 'scratch operand']
  %s0 = inlined_call_operand.hbm [shape: f32[2,8,256], index: 0, kind: input, shape index: {}]
  %s1 = inlined_call_operand.hbm [shape: f32[2,8,256], index: 1, kind: input, shape index: {}]
  %s2 = inlined_call_operand.hbm [shape: f32[2,8,256], index: 2, kind: input, shape index: {}]
  %s3 = inlined_call_operand.hbm [shape: bf16[256,256], index: 3, kind: input, shape index: {}]
  %s4 = inlined_call_operand.hbm [shape: bf16[256,256], index: 4, kind: input, shape index: {}]
  %s5 = inlined_call_operand.hbm [shape: bf16[256,256], index: 5, kind: input, shape index: {}]
  %s6 = inlined_call_operand.hbm [shape: bf16[256,256], index: 6, kind: input, shape index: {}]
  %s7 = inlined_call_operand.vmem [shape: f32[1,256], index: 7, kind: input, shape index: {}]
  %s8 = inlined_call_operand.hbm [shape: f32[2,8,256], index: 8, kind: output, shape index: {0}]
  %s9 = inlined_call_operand.vmem [shape: f32[2,8,64], index: 9, kind: output, shape index: {1}]
  %10 = xla_tuple %s8, %s9
  %s11 = sld [smem:[#allocation0]]
  $region101: #{multi_head_attention.1} parent=0
    _
  %s13 = ssub.s32 1, %s11
  %s14 = scalar_select 0, %s13, %s11
  $region1: #{multi_head_attention.1} parent=0
    #allocation3 [shape = 'u8[16384]{0}', space=vmem, size = 0x4000, scoped, tag = 'input window, operand 0']
    #allocation4 [shape = 's32[2]{0}', space=sflag, size = 0x8, scoped, tag = 'scoped memory for multi_head_attention.1']
    #allocation5 [shape = 's32[2]{0}', space=sflag, size = 0x8, scoped, tag = 'scoped memory for multi_head_attention.1']
    #allocation6 [shape = 'u8[16384]{0}', space=vmem, size = 0x4000, scoped, tag = 'input window, operand 1']
    #allocation7 [shape = 's32[2]{0}', space=sflag, size = 0x8, scoped, tag = 'scoped memory for multi_head_attention.1']
    #allocation8 [shape = 'u8[16384]{0}', space=vmem, size = 0x4000, scoped, tag = 'input window, operand 2']
    #allocation9 [shape = 'u8[131072]{0}', space=vmem, size = 0x20000, scoped, tag = 'input window, operand 3, single buffered']
    #allocation10 [shape = 's32[1]{0}', space=sflag, size = 0x4, scoped, tag = 'scoped memory for multi_head_attention.1']
    #allocation11 [shape = 'u8[131072]{0}', space=vmem, size = 0x20000, scoped, tag = 'input window, operand 4, single buffered']
    #allocation12 [shape = 'u8[131072]{0}', space=vmem, size = 0x20000, scoped, tag = 'input window, operand 5, single buffered']
    #allocation13 [shape = 's32[1]{0}', space=sflag, size = 0x4, scoped, tag = 'scoped memory for multi_head_attention.1']
    #allocation14 [shape = 'u8[131072]{0}', space=vmem, size = 0x20000, scoped, tag = 'input window, operand 6, single buffered']
    #allocation15 [shape = 'u8[16384]{0}', space=vmem, size = 0x4000, scoped, tag = 'output window, operand 0']
    %15 = vsyncpa [#allocation4], 0
    %s16 = scalar_lea.sflag [#allocation4], 1
    %17 = vsyncpa %s16, 0
    %18 = vsyncpa [#allocation7], 0
    %s19 = scalar_lea.sflag [#allocation7], 1
    %20 = vsyncpa %s19, 0
    %21 = vsyncpa [#allocation10], 0
    %22 = vsyncpa [#allocation13], 0
    %23 = vsyncpa [#allocation5], 0
    %s24 = scalar_lea.sflag [#allocation5], 1
    %25 = vsyncpa %s24, 0
    loop: start=0, step=1, limit=4
    $region2: #{multi_head_attention.1} parent=1 // loop_pre_header
      _
    $region3: #{multi_head_attention.1} parent=1 // loop_header
      %s27 = sphi 0, %s31
      %p28 = scmp.ge.s32.totalorder %s27, 4
      %s34 = sphi 0, %s46
      %s35 = sphi 0, %s42
      %s36 = sphi 0, %s34
      %s37 = sphi 0, %s35
      %s38 = sphi 0, %s36
      %s39 = sphi 0, %s37
      %s51 = sphi 0, %s53
      %s54 = sphi 0, %s51
      %s55 = sphi 0, %s54
      %s71 = sphi 0, %s55
      %s77 = sphi 0, %s79
      %s80 = sphi 0, %s77
      %s81 = sphi 0, %s80
      %s97 = sphi 0, %s81
      %s103 = sphi 0, %s105
      %s106 = sphi 0, %s103
      %s107 = sphi 0, %s106
      %s123 = sphi 0, %s107
      %s127 = sphi 0, %s127
      %s129 = sphi 0, %s127
      %s130 = sphi 0, %s129
      %s144 = sphi 0, %s130
      %s148 = sphi 0, %s148
      %s150 = sphi 0, %s148
      %s151 = sphi 0, %s150
      %s165 = sphi 0, %s151
      %s169 = sphi 0, %s169
      %s171 = sphi 0, %s169
      %s172 = sphi 0, %s171
      %s186 = sphi 0, %s172
      %s190 = sphi 0, %s190
      %s192 = sphi 0, %s190
      %s193 = sphi 0, %s192
      %s207 = sphi 0, %s193
      %s211 = sphi 0, %s211
      %s213 = sphi 0, %s211
      %s214 = sphi 0, %s213
      %s228 = sphi 0, %s214
      %s236 = sphi 0, %s238
      %s239 = sphi 0, %s236
      %s240 = sphi 0, %s239
      %s256 = sphi 0, %s240
      %s264 = sphi 0, %s266
      %s267 = sphi 0, %s264
      %s268 = sphi 0, %s267
      %s284 = sphi 0, %s268
    $region4: #{multi_head_attention.1} parent=1 // loop_header_branch
      %30 = sbr.rel (%p28) target = $region8
    $region5: #{multi_head_attention.1} parent=1 // loop_body
      %s32 = ssub.s32 %s27, 1
      %s33 = ssub.s32 %s27, 2
      %s40 = sadd.s32 1, %s35
      %p41 = scmp.ge.s32.totalorder %s40, 1
      %s42 = scalar_select %p41, 0, %s40
      %s43 = sadd.s32 1, %s34
      %s44 = scalar_select %p41, %s43, %s34
      %p45 = scmp.ge.s32.totalorder %s44, 2
      %s46 = scalar_select %p45, 0, %s44
      %s47 = ssub.s32 %s34, %s46
      %s48 = ssub.s32 %s35, %s42
      %s49 = sor.u32 %s47, %s48
      %p50 = scmp.eq.s32.totalorder %s49, 0
      %s52 = sadd.s32 %s51, 1
      %s53 = scalar_select %p50, %s51, %s52
      %p56 = pneg %p50
      %p57 = scmp.eq.s32.totalorder %s27, 1
      %p58 = por %p56, %p57
      %p59 = scmp.ne.s32.totalorder %s51, %s54
      %p60 = scmp.eq.s32.totalorder %s27, 0
      %p61 = por %p59, %p60
      %p62 = scmp.ne.s32.totalorder %s51, %s54
      %p63 = scmp.eq.s32.totalorder %s32, 1
      %p64 = por %p62, %p63
      %p65 = scmp.ne.s32.totalorder %s54, %s55
      %p66 = scmp.eq.s32.totalorder %s32, 0
      %p67 = por %p65, %p66
      %p68 = scmp.ne.s32.totalorder %s54, %s55
      %p69 = scmp.eq.s32.totalorder %s33, 1
      %p70 = por %p68, %p69
      %p72 = scmp.ne.s32.totalorder %s55, %s71
      %p73 = scmp.eq.s32.totalorder %s33, 0
      %p74 = por %p72, %p73
      %s75 = ssub.s32 %s34, %s46
      %p76 = scmp.eq.s32.totalorder %s75, 0
      %s78 = sadd.s32 %s77, 1
      %s79 = scalar_select %p76, %s77, %s78
      %p82 = pneg %p76
      %p83 = scmp.eq.s32.totalorder %s27, 1
      %p84 = por %p82, %p83
      %p85 = scmp.ne.s32.totalorder %s77, %s80
      %p86 = scmp.eq.s32.totalorder %s27, 0
      %p87 = por %p85, %p86
      %p88 = scmp.ne.s32.totalorder %s77, %s80
      %p89 = scmp.eq.s32.totalorder %s32, 1
      %p90 = por %p88, %p89
      %p91 = scmp.ne.s32.totalorder %s80, %s81
      %p92 = scmp.eq.s32.totalorder %s32, 0
      %p93 = por %p91, %p92
      %p94 = scmp.ne.s32.totalorder %s80, %s81
      %p95 = scmp.eq.s32.totalorder %s33, 1
      %p96 = por %p94, %p95
      %p98 = scmp.ne.s32.totalorder %s81, %s97
      %p99 = scmp.eq.s32.totalorder %s33, 0
      %p100 = por %p98, %p99
      %s101 = ssub.s32 %s34, %s46
      %p102 = scmp.eq.s32.totalorder %s101, 0
      %s104 = sadd.s32 %s103, 1
      %s105 = scalar_select %p102, %s103, %s104
      %p108 = pneg %p102
      %p109 = scmp.eq.s32.totalorder %s27, 1
      %p110 = por %p108, %p109
      %p111 = scmp.ne.s32.totalorder %s103, %s106
      %p112 = scmp.eq.s32.totalorder %s27, 0
      %p113 = por %p111, %p112
      %p114 = scmp.ne.s32.totalorder %s103, %s106
      %p115 = scmp.eq.s32.totalorder %s32, 1
      %p116 = por %p114, %p115
      %p117 = scmp.ne.s32.totalorder %s106, %s107
      %p118 = scmp.eq.s32.totalorder %s32, 0
      %p119 = por %p117, %p118
      %p120 = scmp.ne.s32.totalorder %s106, %s107
      %p121 = scmp.eq.s32.totalorder %s33, 1
      %p122 = por %p120, %p121
      %p124 = scmp.ne.s32.totalorder %s107, %s123
      %p125 = scmp.eq.s32.totalorder %s33, 0
      %p126 = por %p124, %p125
      %s128 = sadd.s32 %s127, 1
      %p131 = scmp.eq.s32.totalorder %s27, 1
      %p132 = scmp.ne.s32.totalorder %s127, %s129
      %p133 = scmp.eq.s32.totalorder %s27, 0
      %p134 = por %p132, %p133
      %p135 = scmp.ne.s32.totalorder %s127, %s129
      %p136 = scmp.eq.s32.totalorder %s32, 1
      %p137 = por %p135, %p136
      %p138 = scmp.ne.s32.totalorder %s129, %s130
      %p139 = scmp.eq.s32.totalorder %s32, 0
      %p140 = por %p138, %p139
      %p141 = scmp.ne.s32.totalorder %s129, %s130
      %p142 = scmp.eq.s32.totalorder %s33, 1
      %p143 = por %p141, %p142
      %p145 = scmp.ne.s32.totalorder %s130, %s144
      %p146 = scmp.eq.s32.totalorder %s33, 0
      %p147 = por %p145, %p146
      %s149 = sadd.s32 %s148, 1
      %p152 = scmp.eq.s32.totalorder %s27, 1
      %p153 = scmp.ne.s32.totalorder %s148, %s150
      %p154 = scmp.eq.s32.totalorder %s27, 0
      %p155 = por %p153, %p154
      %p156 = scmp.ne.s32.totalorder %s148, %s150
      %p157 = scmp.eq.s32.totalorder %s32, 1
      %p158 = por %p156, %p157
      %p159 = scmp.ne.s32.totalorder %s150, %s151
      %p160 = scmp.eq.s32.totalorder %s32, 0
      %p161 = por %p159, %p160
      %p162 = scmp.ne.s32.totalorder %s150, %s151
      %p163 = scmp.eq.s32.totalorder %s33, 1
      %p164 = por %p162, %p163
      %p166 = scmp.ne.s32.totalorder %s151, %s165
      %p167 = scmp.eq.s32.totalorder %s33, 0
      %p168 = por %p166, %p167
      %s170 = sadd.s32 %s169, 1
      %p173 = scmp.eq.s32.totalorder %s27, 1
      %p174 = scmp.ne.s32.totalorder %s169, %s171
      %p175 = scmp.eq.s32.totalorder %s27, 0
      %p176 = por %p174, %p175
      %p177 = scmp.ne.s32.totalorder %s169, %s171
      %p178 = scmp.eq.s32.totalorder %s32, 1
      %p179 = por %p177, %p178
      %p180 = scmp.ne.s32.totalorder %s171, %s172
      %p181 = scmp.eq.s32.totalorder %s32, 0
      %p182 = por %p180, %p181
      %p183 = scmp.ne.s32.totalorder %s171, %s172
      %p184 = scmp.eq.s32.totalorder %s33, 1
      %p185 = por %p183, %p184
      %p187 = scmp.ne.s32.totalorder %s172, %s186
      %p188 = scmp.eq.s32.totalorder %s33, 0
      %p189 = por %p187, %p188
      %s191 = sadd.s32 %s190, 1
      %p194 = scmp.eq.s32.totalorder %s27, 1
      %p195 = scmp.ne.s32.totalorder %s190, %s192
      %p196 = scmp.eq.s32.totalorder %s27, 0
      %p197 = por %p195, %p196
      %p198 = scmp.ne.s32.totalorder %s190, %s192
      %p199 = scmp.eq.s32.totalorder %s32, 1
      %p200 = por %p198, %p199
      %p201 = scmp.ne.s32.totalorder %s192, %s193
      %p202 = scmp.eq.s32.totalorder %s32, 0
      %p203 = por %p201, %p202
      %p204 = scmp.ne.s32.totalorder %s192, %s193
      %p205 = scmp.eq.s32.totalorder %s33, 1
      %p206 = por %p204, %p205
      %p208 = scmp.ne.s32.totalorder %s193, %s207
      %p209 = scmp.eq.s32.totalorder %s33, 0
      %p210 = por %p208, %p209
      %s212 = sadd.s32 %s211, 1
      %p215 = scmp.eq.s32.totalorder %s27, 1
      %p216 = scmp.ne.s32.totalorder %s211, %s213
      %p217 = scmp.eq.s32.totalorder %s27, 0
      %p218 = por %p216, %p217
      %p219 = scmp.ne.s32.totalorder %s211, %s213
      %p220 = scmp.eq.s32.totalorder %s32, 1
      %p221 = por %p219, %p220
      %p222 = scmp.ne.s32.totalorder %s213, %s214
      %p223 = scmp.eq.s32.totalorder %s32, 0
      %p224 = por %p222, %p223
      %p225 = scmp.ne.s32.totalorder %s213, %s214
      %p226 = scmp.eq.s32.totalorder %s33, 1
      %p227 = por %p225, %p226
      %p229 = scmp.ne.s32.totalorder %s214, %s228
      %p230 = scmp.eq.s32.totalorder %s33, 0
      %p231 = por %p229, %p230
      %s232 = ssub.s32 %s34, %s46
      %s233 = ssub.s32 %s35, %s42
      %s234 = sor.u32 %s232, %s233
      %p235 = scmp.eq.s32.totalorder %s234, 0
      %s237 = sadd.s32 %s236, 1
      %s238 = scalar_select %p235, %s236, %s237
      %p241 = pneg %p235
      %p242 = scmp.eq.s32.totalorder %s27, 1
      %p243 = por %p241, %p242
      %p244 = scmp.ne.s32.totalorder %s236, %s239
      %p245 = scmp.eq.s32.totalorder %s27, 0
      %p246 = por %p244, %p245
      %p247 = scmp.ne.s32.totalorder %s236, %s239
      %p248 = scmp.eq.s32.totalorder %s32, 1
      %p249 = por %p247, %p248
      %p250 = scmp.ne.s32.totalorder %s239, %s240
      %p251 = scmp.eq.s32.totalorder %s32, 0
      %p252 = por %p250, %p251
      %p253 = scmp.ne.s32.totalorder %s239, %s240
      %p254 = scmp.eq.s32.totalorder %s33, 1
      %p255 = por %p253, %p254
      %p257 = scmp.ne.s32.totalorder %s240, %s256
      %p258 = scmp.eq.s32.totalorder %s33, 0
      %p259 = por %p257, %p258
      %s260 = ssub.s32 %s34, %s46
      %s261 = ssub.s32 %s35, %s42
      %s262 = sor.u32 %s260, %s261
      %p263 = scmp.eq.s32.totalorder %s262, 0
      %s265 = sadd.s32 %s264, 1
      %s266 = scalar_select %p263, %s264, %s265
      %p269 = pneg %p263
      %p270 = scmp.eq.s32.totalorder %s27, 1
      %p271 = por %p269, %p270
      %p272 = scmp.ne.s32.totalorder %s264, %s267
      %p273 = scmp.eq.s32.totalorder %s27, 0
      %p274 = por %p272, %p273
      %p275 = scmp.ne.s32.totalorder %s264, %s267
      %p276 = scmp.eq.s32.totalorder %s32, 1
      %p277 = por %p275, %p276
      %p278 = scmp.ne.s32.totalorder %s267, %s268
      %p279 = scmp.eq.s32.totalorder %s32, 0
      %p280 = por %p278, %p279
      %p281 = scmp.ne.s32.totalorder %s267, %s268
      %p282 = scmp.eq.s32.totalorder %s33, 1
      %p283 = por %p281, %p282
      %p285 = scmp.ne.s32.totalorder %s268, %s284
      %p286 = scmp.eq.s32.totalorder %s33, 0
      %p287 = por %p285, %p286
      %p288 = scmp.le.s32.totalorder 1, %s27
      %p289 = scmp.lt.s32.totalorder %s27, 3
      %p290 = pnand %p288, %p289
      %p291 = pneg %p290
      // Predicated region
      $region9: #{multi_head_attention.1} parent=5 // pred_check
        _
      $region10: #{multi_head_attention.1} parent=5 // pred_check_branch
        %293 = sbr.rel (%p290) target = $region12
      $region11: #{multi_head_attention.1} parent=5 // pred_region
        %s294 = ssub.s32 %s27, 1
        // Predicated region
        $region13: #{multi_head_attention.1} parent=11 // pred_check
          %p295 = pneg %p140
        $region14: #{multi_head_attention.1} parent=11 // pred_check_branch
          %297 = sbr.rel (%p295) target = $region16
        $region15: #{multi_head_attention.1} parent=11 // pred_region
          %s299 = ssub.s32 4096, 4096
          %300 = vsyncadd [#allocation10], %s299
          %s301 = sshll.u32 [#allocation9], 4
          %s302 = int_to_ptr.vmem [resolvable:$true] %s301
          %307 = dma.hbm_to_vmem [thread:$0]  %s3, 4096, %s302, [#allocation10], 128, 128, 8
        $region16: #{multi_head_attention.1} parent=11 // pred_fallthru
          _
        // Predicated region
        $region17: #{multi_head_attention.1} parent=11 // pred_check
          %p308 = pneg %p161
        $region18: #{multi_head_attention.1} parent=11 // pred_check_branch
          %310 = sbr.rel (%p308) target = $region20
        $region19: #{multi_head_attention.1} parent=11 // pred_region
          %s312 = ssub.s32 4096, 4096
          %313 = vsyncadd [#allocation10], %s312
          %s314 = sshll.u32 [#allocation11], 4
          %s315 = int_to_ptr.vmem [resolvable:$true] %s314
          %320 = dma.hbm_to_vmem [thread:$0]  %s4, 4096, %s315, [#allocation10], 128, 128, 8
        $region20: #{multi_head_attention.1} parent=11 // pred_fallthru
          _
        // Predicated region
        $region21: #{multi_head_attention.1} parent=11 // pred_check
          %p321 = pneg %p182
        $region22: #{multi_head_attention.1} parent=11 // pred_check_branch
          %323 = sbr.rel (%p321) target = $region24
        $region23: #{multi_head_attention.1} parent=11 // pred_region
          %s325 = ssub.s32 4096, 4096
          %326 = vsyncadd [#allocation13], %s325
          %s327 = sshll.u32 [#allocation12], 4
          %s328 = int_to_ptr.vmem [resolvable:$true] %s327
          %333 = dma.hbm_to_vmem [thread:$0]  %s5, 4096, %s328, [#allocation13], 128, 128, 8
        $region24: #{multi_head_attention.1} parent=11 // pred_fallthru
          _
        // Predicated region
        $region25: #{multi_head_attention.1} parent=11 // pred_check
          %p334 = pneg %p203
        $region26: #{multi_head_attention.1} parent=11 // pred_check_branch
          %336 = sbr.rel (%p334) target = $region28
        $region27: #{multi_head_attention.1} parent=11 // pred_region
          %s338 = ssub.s32 4096, 4096
          %339 = vsyncadd [#allocation13], %s338
          %s340 = sshll.u32 [#allocation14], 4
          %s341 = int_to_ptr.vmem [resolvable:$true] %s340
          %346 = dma.hbm_to_vmem [thread:$0]  %s6, 4096, %s341, [#allocation13], 128, 128, 8
        $region28: #{multi_head_attention.1} parent=11 // pred_fallthru
          _
        // Predicated region
        $region29: #{multi_head_attention.1} parent=11 // pred_check
          %p347 = pneg %p224
        $region30: #{multi_head_attention.1} parent=11 // pred_check_branch
          %349 = sbr.rel (%p347) target = $region32
        $region31: #{multi_head_attention.1} parent=11 // pred_region
          _
        $region32: #{multi_head_attention.1} parent=11 // pred_fallthru
          _
      $region12: #{multi_head_attention.1} parent=5 // pred_fallthru
        _
      %p350 = scmp.lt.s32.totalorder %s27, 2
      // Predicated region
      $region33: #{multi_head_attention.1} parent=5 // pred_check
        %p351 = pneg %p350
      $region34: #{multi_head_attention.1} parent=5 // pred_check_branch
        %353 = sbr.rel (%p351) target = $region36
      $region35: #{multi_head_attention.1} parent=5 // pred_region
        // Predicated region
        $region37: #{multi_head_attention.1} parent=35 // pred_check
          %p354 = pneg %p61
        $region38: #{multi_head_attention.1} parent=35 // pred_check_branch
          %356 = sbr.rel (%p354) target = $region40
        $region39: #{multi_head_attention.1} parent=35 // pred_region
          %s357 = sand.u32 %s51, 1
          %s358 = scalar_lea.sflag [#allocation4], %s357
          %s359 = sand.u32 %s51, 1
          %s360 = smul.addr %s359, 16
          %s361 = scalar_lea.vmem [#allocation3], %s360
          %s363 = ssub.s32 256, 256
          %364 = vsyncadd %s358, %s363
          %s365 = smul.addr %s35, 2
          %s366 = smul.addr %s34, 2
          %s367 = sadd.s32 %s365, %s366
          %s368 = smul.addr %s367, 128
          %s369 = scalar_lea.hbm %s0, %s368
          %s371 = sshll.u32 %s361, 4
          %s372 = int_to_ptr.vmem [resolvable:$true] %s371
          %374 = dma.hbm_to_vmem [thread:$0]  %s369, 256, %s372, %s358
        $region40: #{multi_head_attention.1} parent=35 // pred_fallthru
          _
        // Predicated region
        $region41: #{multi_head_attention.1} parent=35 // pred_check
          %p375 = pneg %p87
        $region42: #{multi_head_attention.1} parent=35 // pred_check_branch
          %377 = sbr.rel (%p375) target = $region44
        $region43: #{multi_head_attention.1} parent=35 // pred_region
          %s378 = sand.u32 %s27, 1
          %s379 = scalar_lea.sflag [#allocation7], %s378
          %s380 = sand.u32 %s77, 1
          %s381 = smul.addr %s380, 16
          %s382 = scalar_lea.vmem [#allocation6], %s381
          %s384 = ssub.s32 256, 256
          %385 = vsyncadd %s379, %s384
          %s386 = smul.addr %s34, 2
          %s387 = smul.addr %s386, 128
          %s388 = scalar_lea.hbm %s1, %s387
          %s390 = sshll.u32 %s382, 4
          %s391 = int_to_ptr.vmem [resolvable:$true] %s390
          %393 = dma.hbm_to_vmem [thread:$0]  %s388, 256, %s391, %s379
        $region44: #{multi_head_attention.1} parent=35 // pred_fallthru
          _
        // Predicated region
        $region45: #{multi_head_attention.1} parent=35 // pred_check
          %p394 = pneg %p113
        $region46: #{multi_head_attention.1} parent=35 // pred_check_branch
          %396 = sbr.rel (%p394) target = $region48
        $region47: #{multi_head_attention.1} parent=35 // pred_region
          %s397 = sand.u32 %s27, 1
          %s398 = scalar_lea.sflag [#allocation7], %s397
          %s399 = sand.u32 %s103, 1
          %s400 = smul.addr %s399, 16
          %s401 = scalar_lea.vmem [#allocation8], %s400
          %s403 = ssub.s32 256, 256
          %404 = vsyncadd %s398, %s403
          %s405 = smul.addr %s34, 2
          %s406 = smul.addr %s405, 128
          %s407 = scalar_lea.hbm %s2, %s406
          %s409 = sshll.u32 %s401, 4
          %s410 = int_to_ptr.vmem [resolvable:$true] %s409
          %412 = dma.hbm_to_vmem [thread:$0]  %s407, 256, %s410, %s398
        $region48: #{multi_head_attention.1} parent=35 // pred_fallthru
          _
      $region36: #{multi_head_attention.1} parent=5 // pred_fallthru
        _
      %p413 = scmp.le.s32.totalorder 1, %s27
      %p414 = scmp.lt.s32.totalorder %s27, 3
      %p415 = pnand %p413, %p414
      %p416 = pneg %p415
      // Predicated region
      $region49: #{multi_head_attention.1} parent=5 // pred_check
        _
      $region50: #{multi_head_attention.1} parent=5 // pred_check_branch
        %418 = sbr.rel (%p415) target = $region52
      $region51: #{multi_head_attention.1} parent=5 // pred_region
        %s419 = ssub.s32 %s27, 1
        %s420 = sand.u32 %s54, 1
        %s421 = scalar_lea.sflag [#allocation4], %s420
        %s422 = sand.u32 %s54, 1
        %s423 = smul.addr %s422, 16
        %s424 = scalar_lea.vmem [#allocation3], %s423
        // Predicated region
        $region53: #{multi_head_attention.1} parent=51 // pred_check
          %p425 = pneg %p67
        $region54: #{multi_head_attention.1} parent=51 // pred_check_branch
          %427 = sbr.rel (%p425) target = $region56
        $region55: #{multi_head_attention.1} parent=51 // pred_region
          %428 = dma.done %s421, 256
        $region56: #{multi_head_attention.1} parent=51 // pred_fallthru
          _
        %s429 = sand.u32 %s32, 1
        %s430 = scalar_lea.sflag [#allocation7], %s429
        %s431 = sand.u32 %s80, 1
        %s432 = smul.addr %s431, 16
        %s433 = scalar_lea.vmem [#allocation6], %s432
        // Predicated region
        $region57: #{multi_head_attention.1} parent=51 // pred_check
          %p434 = pneg %p93
        $region58: #{multi_head_attention.1} parent=51 // pred_check_branch
          %436 = sbr.rel (%p434) target = $region60
        $region59: #{multi_head_attention.1} parent=51 // pred_region
          %437 = dma.done %s430, 256
        $region60: #{multi_head_attention.1} parent=51 // pred_fallthru
          _
        %s438 = sand.u32 %s32, 1
        %s439 = scalar_lea.sflag [#allocation7], %s438
        %s440 = sand.u32 %s106, 1
        %s441 = smul.addr %s440, 16
        %s442 = scalar_lea.vmem [#allocation8], %s441
        // Predicated region
        $region61: #{multi_head_attention.1} parent=51 // pred_check
          %p443 = pneg %p119
        $region62: #{multi_head_attention.1} parent=51 // pred_check_branch
          %445 = sbr.rel (%p443) target = $region64
        $region63: #{multi_head_attention.1} parent=51 // pred_region
          %446 = dma.done %s439, 256
        $region64: #{multi_head_attention.1} parent=51 // pred_fallthru
          _
        // Predicated region
        $region65: #{multi_head_attention.1} parent=51 // pred_check
          %p447 = pneg %p140
        $region66: #{multi_head_attention.1} parent=51 // pred_check_branch
          %449 = sbr.rel (%p447) target = $region68
        $region67: #{multi_head_attention.1} parent=51 // pred_region
          %450 = dma.done [#allocation10], 4096
        $region68: #{multi_head_attention.1} parent=51 // pred_fallthru
          _
        // Predicated region
        $region69: #{multi_head_attention.1} parent=51 // pred_check
          %p451 = pneg %p161
        $region70: #{multi_head_attention.1} parent=51 // pred_check_branch
          %453 = sbr.rel (%p451) target = $region72
        $region71: #{multi_head_attention.1} parent=51 // pred_region
          %454 = dma.done [#allocation10], 4096
        $region72: #{multi_head_attention.1} parent=51 // pred_fallthru
          _
        // Predicated region
        $region73: #{multi_head_attention.1} parent=51 // pred_check
          %p455 = pneg %p182
        $region74: #{multi_head_attention.1} parent=51 // pred_check_branch
          %457 = sbr.rel (%p455) target = $region76
        $region75: #{multi_head_attention.1} parent=51 // pred_region
          %458 = dma.done [#allocation13], 4096
        $region76: #{multi_head_attention.1} parent=51 // pred_fallthru
          _
        // Predicated region
        $region77: #{multi_head_attention.1} parent=51 // pred_check
          %p459 = pneg %p203
        $region78: #{multi_head_attention.1} parent=51 // pred_check_branch
          %461 = sbr.rel (%p459) target = $region80
        $region79: #{multi_head_attention.1} parent=51 // pred_region
          %462 = dma.done [#allocation13], 4096
        $region80: #{multi_head_attention.1} parent=51 // pred_fallthru
          _
        %s463 = sand.u32 %s54, 1
        %s464 = scalar_lea.sflag [#allocation4], %s463
        %s465 = sand.u32 %s54, 1
        %s466 = smul.addr %s465, 16
        %s467 = scalar_lea.vmem [#allocation3], %s466
        %p468 = pneg %p67
        %p469 = pneg %p64
        %s470 = sand.u32 %s32, 1
        %s471 = scalar_lea.sflag [#allocation7], %s470
        %s472 = sand.u32 %s80, 1
        %s473 = smul.addr %s472, 16
        %s474 = scalar_lea.vmem [#allocation6], %s473
        %p475 = pneg %p93
        %p476 = pneg %p90
        %s477 = sand.u32 %s32, 1
        %s478 = scalar_lea.sflag [#allocation7], %s477
        %s479 = sand.u32 %s106, 1
        %s480 = smul.addr %s479, 16
        %s481 = scalar_lea.vmem [#allocation8], %s480
        %p482 = pneg %p119
        %p483 = pneg %p116
        %p484 = pneg %p140
        %p485 = pneg %p137
        %p486 = pneg %p161
        %p487 = pneg %p158
        %p488 = pneg %p182
        %p489 = pneg %p179
        %p490 = pneg %p203
        %p491 = pneg %p200
        %p492 = pneg %p224
        %p493 = pneg %p221
        %p494 = pneg %p252
        %p495 = pneg %p249
        %s496 = sand.u32 %s239, 1
        %s497 = scalar_lea.sflag [#allocation5], %s496
        %s498 = sand.u32 %s239, 1
        %s499 = smul.addr %s498, 16
        %s500 = scalar_lea.vmem [#allocation15], %s499
        %p501 = pneg %p280
        %p502 = pneg %p277
        %p503 = scmp.lt.s32.totalorder %s36, 1
        %s504 = scalar_select %p503, %s36, 1
        %p505 = scmp.lt.s32.totalorder %s37, 0
        %s506 = scalar_select %p505, %s37, 0
        %s507 = sadd.s32 %s506, %s504
        %s508 = smul.addr %s507, 8
        %s509 = scalar_lea.vmem %s9, %s508
        %p510 = scmp.lt.s32.totalorder %s36, 1
        %s511 = scalar_select %p510, %s36, 1
        %p512 = scmp.lt.s32.totalorder %s37, 0
        %s513 = scalar_select %p512, %s37, 0
        %s514 = sadd.s32 %s513, %s511
        %s515 = smul.addr %s514, 8
        %s516 = scalar_lea.vmem %s9, %s515
        %v518 = vld [vmem:[%s424] sm:$0xff]
        %v519 = vld [vmem:[%s424 + $0x8] sm:$0xff]
        %v520 = vpack.c.bf16 %v518, %v518
        %v521 = vpack.c.bf16 %v519, %v519
        %v522 = vld [vmem:[%s433] sm:$0xff]
        %v523 = vld [vmem:[%s433 + $0x8] sm:$0xff]
        %v524 = vpack.c.bf16 %v522, %v522
        %v525 = vpack.c.bf16 %v523, %v523
        %v526 = vld [vmem:[%s442] sm:$0xff]
        %v527 = vld [vmem:[%s442 + $0x8] sm:$0xff]
        %v528 = vpack.c.bf16 %v526, %v526
        %v529 = vpack.c.bf16 %v527, %v527
        %v530 = vld [vmem:[#allocation9] sm:$0xff]
        %v531 = vld [vmem:[#allocation9 + $0x8] sm:$0xff]
        %v532 = vld [vmem:[#allocation9 + $0x10] sm:$0xff]
        %v533 = vld [vmem:[#allocation9 + $0x18] sm:$0xff]
        %v534 = vld [vmem:[#allocation9 + $0x20] sm:$0xff]
        %v535 = vld [vmem:[#allocation9 + $0x28] sm:$0xff]
        %v536 = vld [vmem:[#allocation9 + $0x30] sm:$0xff]
        %v537 = vld [vmem:[#allocation9 + $0x38] sm:$0xff]
        %v538 = vld [vmem:[#allocation9 + $0x40] sm:$0xff]
        %v539 = vld [vmem:[#allocation9 + $0x48] sm:$0xff]
        %v540 = vld [vmem:[#allocation9 + $0x50] sm:$0xff]
        %v541 = vld [vmem:[#allocation9 + $0x58] sm:$0xff]
        %v542 = vld [vmem:[#allocation9 + $0x60] sm:$0xff]
        %v543 = vld [vmem:[#allocation9 + $0x68] sm:$0xff]
        %v544 = vld [vmem:[#allocation9 + $0x70] sm:$0xff]
        %v545 = vld [vmem:[#allocation9 + $0x78] sm:$0xff]
        %v546 = vld [vmem:[#allocation9 + $0x80] sm:$0xff]
        %v547 = vld [vmem:[#allocation9 + $0x88] sm:$0xff]
        %v548 = vld [vmem:[#allocation9 + $0x90] sm:$0xff]
        %v549 = vld [vmem:[#allocation9 + $0x98] sm:$0xff]
        %v550 = vld [vmem:[#allocation9 + $0xa0] sm:$0xff]
        %v551 = vld [vmem:[#allocation9 + $0xa8] sm:$0xff]
        %v552 = vld [vmem:[#allocation9 + $0xb0] sm:$0xff]
        %v553 = vld [vmem:[#allocation9 + $0xb8] sm:$0xff]
        %v554 = vld [vmem:[#allocation9 + $0xc0] sm:$0xff]
        %v555 = vld [vmem:[#allocation9 + $0xc8] sm:$0xff]
        %v556 = vld [vmem:[#allocation9 + $0xd0] sm:$0xff]
        %v557 = vld [vmem:[#allocation9 + $0xd8] sm:$0xff]
        %v558 = vld [vmem:[#allocation9 + $0xe0] sm:$0xff]
        %v559 = vld [vmem:[#allocation9 + $0xe8] sm:$0xff]
        %v560 = vld [vmem:[#allocation9 + $0xf0] sm:$0xff]
        %v561 = vld [vmem:[#allocation9 + $0xf8] sm:$0xff]
        %v594 = vunpack.c.l.b16 %v530
        %v595 = vunpack.c.h.b16 %v530
        %v596 = vunpack.c.l.b16 %v531
        %v597 = vunpack.c.h.b16 %v531
        %v598 = vunpack.c.l.b16 %v532
        %v599 = vunpack.c.h.b16 %v532
        %v600 = vunpack.c.l.b16 %v533
        %v601 = vunpack.c.h.b16 %v533
        %v602 = vunpack.c.l.b16 %v534
        %v603 = vunpack.c.h.b16 %v534
        %v604 = vunpack.c.l.b16 %v535
        %v605 = vunpack.c.h.b16 %v535
        %v606 = vunpack.c.l.b16 %v536
        %v607 = vunpack.c.h.b16 %v536
        %v608 = vunpack.c.l.b16 %v537
        %v609 = vunpack.c.h.b16 %v537
        %v610 = vunpack.c.l.b16 %v538
        %v611 = vunpack.c.h.b16 %v538
        %v612 = vunpack.c.l.b16 %v539
        %v613 = vunpack.c.h.b16 %v539
        %v614 = vunpack.c.l.b16 %v540
        %v615 = vunpack.c.h.b16 %v540
        %v616 = vunpack.c.l.b16 %v541
        %v617 = vunpack.c.h.b16 %v541
        %v618 = vunpack.c.l.b16 %v542
        %v619 = vunpack.c.h.b16 %v542
        %v620 = vunpack.c.l.b16 %v543
        %v621 = vunpack.c.h.b16 %v543
        %v622 = vunpack.c.l.b16 %v544
        %v623 = vunpack.c.h.b16 %v544
        %v624 = vunpack.c.l.b16 %v545
        %v625 = vunpack.c.h.b16 %v545
        %v626 = vunpack.c.l.b16 %v546
        %v627 = vunpack.c.h.b16 %v546
        %v628 = vunpack.c.l.b16 %v547
        %v629 = vunpack.c.h.b16 %v547
        %v630 = vunpack.c.l.b16 %v548
        %v631 = vunpack.c.h.b16 %v548
        %v632 = vunpack.c.l.b16 %v549
        %v633 = vunpack.c.h.b16 %v549
        %v634 = vunpack.c.l.b16 %v550
        %v635 = vunpack.c.h.b16 %v550
        %v636 = vunpack.c.l.b16 %v551
        %v637 = vunpack.c.h.b16 %v551
        %v638 = vunpack.c.l.b16 %v552
        %v639 = vunpack.c.h.b16 %v552
        %v640 = vunpack.c.l.b16 %v553
        %v641 = vunpack.c.h.b16 %v553
        %v642 = vunpack.c.l.b16 %v554
        %v643 = vunpack.c.h.b16 %v554
        %v644 = vunpack.c.l.b16 %v555
        %v645 = vunpack.c.h.b16 %v555
        %v646 = vunpack.c.l.b16 %v556
        %v647 = vunpack.c.h.b16 %v556
        %v648 = vunpack.c.l.b16 %v557
        %v649 = vunpack.c.h.b16 %v557
        %v650 = vunpack.c.l.b16 %v558
        %v651 = vunpack.c.h.b16 %v558
        %v652 = vunpack.c.l.b16 %v559
        %v653 = vunpack.c.h.b16 %v559
        %v654 = vunpack.c.l.b16 %v560
        %v655 = vunpack.c.h.b16 %v560
        %v656 = vunpack.c.l.b16 %v561
        %v657 = vunpack.c.h.b16 %v561
        %v658 = vpack.c.b16 %v596, %v594
        %v659 = vpack.c.b16 %v597, %v595
        %v660 = vpack.c.b16 %v600, %v598
        %v661 = vpack.c.b16 %v601, %v599
        %v662 = vpack.c.b16 %v604, %v602
        %v663 = vpack.c.b16 %v605, %v603
        %v664 = vpack.c.b16 %v608, %v606
        %v665 = vpack.c.b16 %v609, %v607
        %v666 = vpack.c.b16 %v612, %v610
        %v667 = vpack.c.b16 %v613, %v611
        %v668 = vpack.c.b16 %v616, %v614
        %v669 = vpack.c.b16 %v617, %v615
        %v670 = vpack.c.b16 %v620, %v618
        %v671 = vpack.c.b16 %v621, %v619
        %v672 = vpack.c.b16 %v624, %v622
        %v673 = vpack.c.b16 %v625, %v623
        %v674 = vpack.c.b16 %v628, %v626
        %v675 = vpack.c.b16 %v629, %v627
        %v676 = vpack.c.b16 %v632, %v630
        %v677 = vpack.c.b16 %v633, %v631
        %v678 = vpack.c.b16 %v636, %v634
        %v679 = vpack.c.b16 %v637, %v635
        %v680 = vpack.c.b16 %v640, %v638
        %v681 = vpack.c.b16 %v641, %v639
        %v682 = vpack.c.b16 %v644, %v642
        %v683 = vpack.c.b16 %v645, %v643
        %v684 = vpack.c.b16 %v648, %v646
        %v685 = vpack.c.b16 %v649, %v647
        %v686 = vpack.c.b16 %v652, %v650
        %v687 = vpack.c.b16 %v653, %v651
        %v688 = vpack.c.b16 %v656, %v654
        %v689 = vpack.c.b16 %v657, %v655
        %722 = vmatprep.subr.bf16.mxu0 %v659
        %723 = vmatpush1.bf16.msra.mxu0 %v658
        %724 = vmatprep.subr.bf16.mxu0 %v661
        %725 = vmatpush1.bf16.msra.mxu0 %v660
        %726 = vmatprep.subr.bf16.mxu0 %v663
        %727 = vmatpush1.bf16.msra.mxu0 %v662
        %728 = vmatprep.subr.bf16.mxu0 %v665
        %729 = vmatpush1.bf16.msra.mxu0 %v664
        %730 = vmatprep.subr.bf16.mxu0 %v667
        %731 = vmatpush1.bf16.msra.mxu0 %v666
        %732 = vmatprep.subr.bf16.mxu0 %v669
        %733 = vmatpush1.bf16.msra.mxu0 %v668
        %734 = vmatprep.subr.bf16.mxu0 %v671
        %735 = vmatpush1.bf16.msra.mxu0 %v670
        %736 = vmatprep.subr.bf16.mxu0 %v673
        %737 = vmatpush1.bf16.msra.mxu0 %v672
        %738 = vmatprep.subr.bf16.mxu0 %v675
        %739 = vmatpush1.bf16.msra.mxu0 %v674
        %740 = vmatprep.subr.bf16.mxu0 %v677
        %741 = vmatpush1.bf16.msra.mxu0 %v676
        %742 = vmatprep.subr.bf16.mxu0 %v679
        %743 = vmatpush1.bf16.msra.mxu0 %v678
        %744 = vmatprep.subr.bf16.mxu0 %v681
        %745 = vmatpush1.bf16.msra.mxu0 %v680
        %746 = vmatprep.subr.bf16.mxu0 %v683
        %747 = vmatpush1.bf16.msra.mxu0 %v682
        %748 = vmatprep.subr.bf16.mxu0 %v685
        %749 = vmatpush1.bf16.msra.mxu0 %v684
        %750 = vmatprep.subr.bf16.mxu0 %v687
        %751 = vmatpush1.bf16.msra.mxu0 %v686
        %752 = vmatprep.subr.bf16.mxu0 %v689
        %753 = vmatpush1.bf16.msra.mxu0 %v688
        %754 = vmatprep.mubr.bf16.mxu0 %v521
        %755 = vmatmul.mubr.bf16.gmra.mrb[0].mxu0 %v520
        %v756 = vpop.f32.mrb[0].mxu0
        %v757 = vadd.f32 0.0, %v756
        %v758 = vpop.f32.mrb[0].mxu0
        %v759 = vadd.f32 0.0, %v758
        %v760 = vpop.f32.mrb[0].mxu0
        %v761 = vpop.f32.mrb[0].mxu0
        %762 = vdwg.mxu0
        %v763 = vld [vmem:[#allocation11] sm:$0xff]
        %v764 = vld [vmem:[#allocation11 + $0x8] sm:$0xff]
        %v765 = vld [vmem:[#allocation11 + $0x10] sm:$0xff]
        %v766 = vld [vmem:[#allocation11 + $0x18] sm:$0xff]
        %v767 = vld [vmem:[#allocation11 + $0x20] sm:$0xff]
        %v768 = vld [vmem:[#allocation11 + $0x28] sm:$0xff]
        %v769 = vld [vmem:[#allocation11 + $0x30] sm:$0xff]
        %v770 = vld [vmem:[#allocation11 + $0x38] sm:$0xff]
        %v771 = vld [vmem:[#allocation11 + $0x40] sm:$0xff]
        %v772 = vld [vmem:[#allocation11 + $0x48] sm:$0xff]
        %v773 = vld [vmem:[#allocation11 + $0x50] sm:$0xff]
        %v774 = vld [vmem:[#allocation11 + $0x58] sm:$0xff]
        %v775 = vld [vmem:[#allocation11 + $0x60] sm:$0xff]
        %v776 = vld [vmem:[#allocation11 + $0x68] sm:$0xff]
        %v777 = vld [vmem:[#allocation11 + $0x70] sm:$0xff]
        %v778 = vld [vmem:[#allocation11 + $0x78] sm:$0xff]
        %v779 = vld [vmem:[#allocation11 + $0x80] sm:$0xff]
        %v780 = vld [vmem:[#allocation11 + $0x88] sm:$0xff]
        %v781 = vld [vmem:[#allocation11 + $0x90] sm:$0xff]
        %v782 = vld [vmem:[#allocation11 + $0x98] sm:$0xff]
        %v783 = vld [vmem:[#allocation11 + $0xa0] sm:$0xff]
        %v784 = vld [vmem:[#allocation11 + $0xa8] sm:$0xff]
        %v785 = vld [vmem:[#allocation11 + $0xb0] sm:$0xff]
        %v786 = vld [vmem:[#allocation11 + $0xb8] sm:$0xff]
        %v787 = vld [vmem:[#allocation11 + $0xc0] sm:$0xff]
        %v788 = vld [vmem:[#allocation11 + $0xc8] sm:$0xff]
        %v789 = vld [vmem:[#allocation11 + $0xd0] sm:$0xff]
        %v790 = vld [vmem:[#allocation11 + $0xd8] sm:$0xff]
        %v791 = vld [vmem:[#allocation11 + $0xe0] sm:$0xff]
        %v792 = vld [vmem:[#allocation11 + $0xe8] sm:$0xff]
        %v793 = vld [vmem:[#allocation11 + $0xf0] sm:$0xff]
        %v794 = vld [vmem:[#allocation11 + $0xf8] sm:$0xff]
        %v827 = vunpack.c.l.b16 %v763
        %v828 = vunpack.c.h.b16 %v763
        %v829 = vunpack.c.l.b16 %v764
        %v830 = vunpack.c.h.b16 %v764
        %v831 = vunpack.c.l.b16 %v765
        %v832 = vunpack.c.h.b16 %v765
        %v833 = vunpack.c.l.b16 %v766
        %v834 = vunpack.c.h.b16 %v766
        %v835 = vunpack.c.l.b16 %v767
        %v836 = vunpack.c.h.b16 %v767
        %v837 = vunpack.c.l.b16 %v768
        %v838 = vunpack.c.h.b16 %v768
        %v839 = vunpack.c.l.b16 %v769
        %v840 = vunpack.c.h.b16 %v769
        %v841 = vunpack.c.l.b16 %v770
        %v842 = vunpack.c.h.b16 %v770
        %v843 = vunpack.c.l.b16 %v771
        %v844 = vunpack.c.h.b16 %v771
        %v845 = vunpack.c.l.b16 %v772
        %v846 = vunpack.c.h.b16 %v772
        %v847 = vunpack.c.l.b16 %v773
        %v848 = vunpack.c.h.b16 %v773
        %v849 = vunpack.c.l.b16 %v774
        %v850 = vunpack.c.h.b16 %v774
        %v851 = vunpack.c.l.b16 %v775
        %v852 = vunpack.c.h.b16 %v775
        %v853 = vunpack.c.l.b16 %v776
        %v854 = vunpack.c.h.b16 %v776
        %v855 = vunpack.c.l.b16 %v777
        %v856 = vunpack.c.h.b16 %v777
        %v857 = vunpack.c.l.b16 %v778
        %v858 = vunpack.c.h.b16 %v778
        %v859 = vunpack.c.l.b16 %v779
        %v860 = vunpack.c.h.b16 %v779
        %v861 = vunpack.c.l.b16 %v780
        %v862 = vunpack.c.h.b16 %v780
        %v863 = vunpack.c.l.b16 %v781
        %v864 = vunpack.c.h.b16 %v781
        %v865 = vunpack.c.l.b16 %v782
        %v866 = vunpack.c.h.b16 %v782
        %v867 = vunpack.c.l.b16 %v783
        %v868 = vunpack.c.h.b16 %v783
        %v869 = vunpack.c.l.b16 %v784
        %v870 = vunpack.c.h.b16 %v784
        %v871 = vunpack.c.l.b16 %v785
        %v872 = vunpack.c.h.b16 %v785
        %v873 = vunpack.c.l.b16 %v786
        %v874 = vunpack.c.h.b16 %v786
        %v875 = vunpack.c.l.b16 %v787
        %v876 = vunpack.c.h.b16 %v787
        %v877 = vunpack.c.l.b16 %v788
        %v878 = vunpack.c.h.b16 %v788
        %v879 = vunpack.c.l.b16 %v789
        %v880 = vunpack.c.h.b16 %v789
        %v881 = vunpack.c.l.b16 %v790
        %v882 = vunpack.c.h.b16 %v790
        %v883 = vunpack.c.l.b16 %v791
        %v884 = vunpack.c.h.b16 %v791
        %v885 = vunpack.c.l.b16 %v792
        %v886 = vunpack.c.h.b16 %v792
        %v887 = vunpack.c.l.b16 %v793
        %v888 = vunpack.c.h.b16 %v793
        %v889 = vunpack.c.l.b16 %v794
        %v890 = vunpack.c.h.b16 %v794
        %v891 = vpack.c.b16 %v829, %v827
        %v892 = vpack.c.b16 %v830, %v828
        %v893 = vpack.c.b16 %v833, %v831
        %v894 = vpack.c.b16 %v834, %v832
        %v895 = vpack.c.b16 %v837, %v835
        %v896 = vpack.c.b16 %v838, %v836
        %v897 = vpack.c.b16 %v841, %v839
        %v898 = vpack.c.b16 %v842, %v840
        %v899 = vpack.c.b16 %v845, %v843
        %v900 = vpack.c.b16 %v846, %v844
        %v901 = vpack.c.b16 %v849, %v847
        %v902 = vpack.c.b16 %v850, %v848
        %v903 = vpack.c.b16 %v853, %v851
        %v904 = vpack.c.b16 %v854, %v852
        %v905 = vpack.c.b16 %v857, %v855
        %v906 = vpack.c.b16 %v858, %v856
        %v907 = vpack.c.b16 %v861, %v859
        %v908 = vpack.c.b16 %v862, %v860
        %v909 = vpack.c.b16 %v865, %v863
        %v910 = vpack.c.b16 %v866, %v864
        %v911 = vpack.c.b16 %v869, %v867
        %v912 = vpack.c.b16 %v870, %v868
        %v913 = vpack.c.b16 %v873, %v871
        %v914 = vpack.c.b16 %v874, %v872
        %v915 = vpack.c.b16 %v877, %v875
        %v916 = vpack.c.b16 %v878, %v876
        %v917 = vpack.c.b16 %v881, %v879
        %v918 = vpack.c.b16 %v882, %v880
        %v919 = vpack.c.b16 %v885, %v883
        %v920 = vpack.c.b16 %v886, %v884
        %v921 = vpack.c.b16 %v889, %v887
        %v922 = vpack.c.b16 %v890, %v888
        %955 = vmatprep.subr.bf16.mxu0 %v892
        %956 = vmatpush1.bf16.msra.mxu0 %v891
        %957 = vmatprep.subr.bf16.mxu0 %v894
        %958 = vmatpush1.bf16.msra.mxu0 %v893
        %959 = vmatprep.subr.bf16.mxu0 %v896
        %960 = vmatpush1.bf16.msra.mxu0 %v895
        %961 = vmatprep.subr.bf16.mxu0 %v898
        %962 = vmatpush1.bf16.msra.mxu0 %v897
        %963 = vmatprep.subr.bf16.mxu0 %v900
        %964 = vmatpush1.bf16.msra.mxu0 %v899
        %965 = vmatprep.subr.bf16.mxu0 %v902
        %966 = vmatpush1.bf16.msra.mxu0 %v901
        %967 = vmatprep.subr.bf16.mxu0 %v904
        %968 = vmatpush1.bf16.msra.mxu0 %v903
        %969 = vmatprep.subr.bf16.mxu0 %v906
        %970 = vmatpush1.bf16.msra.mxu0 %v905
        %971 = vmatprep.subr.bf16.mxu0 %v908
        %972 = vmatpush1.bf16.msra.mxu0 %v907
        %973 = vmatprep.subr.bf16.mxu0 %v910
        %974 = vmatpush1.bf16.msra.mxu0 %v909
        %975 = vmatprep.subr.bf16.mxu0 %v912
        %976 = vmatpush1.bf16.msra.mxu0 %v911
        %977 = vmatprep.subr.bf16.mxu0 %v914
        %978 = vmatpush1.bf16.msra.mxu0 %v913
        %979 = vmatprep.subr.bf16.mxu0 %v916
        %980 = vmatpush1.bf16.msra.mxu0 %v915
        %981 = vmatprep.subr.bf16.mxu0 %v918
        %982 = vmatpush1.bf16.msra.mxu0 %v917
        %983 = vmatprep.subr.bf16.mxu0 %v920
        %984 = vmatpush1.bf16.msra.mxu0 %v919
        %985 = vmatprep.subr.bf16.mxu0 %v922
        %986 = vmatpush1.bf16.msra.mxu0 %v921
        %987 = vmatprep.mubr.bf16.mxu0 %v525
        %988 = vmatmul.mubr.bf16.gmra.mrb[0].mxu0 %v524
        %v989 = vpop.f32.mrb[0].mxu0
        %v990 = vadd.f32 0.0, %v989
        %v991 = vpop.f32.mrb[0].mxu0
        %v992 = vadd.f32 0.0, %v991
        %v993 = vpop.f32.mrb[0].mxu0
        %v994 = vpop.f32.mrb[0].mxu0
        %995 = vdwg.mxu0
        %v996 = vld [vmem:[#allocation12] sm:$0xff]
        %v997 = vld [vmem:[#allocation12 + $0x8] sm:$0xff]
        %v998 = vld [vmem:[#allocation12 + $0x10] sm:$0xff]
        %v999 = vld [vmem:[#allocation12 + $0x18] sm:$0xff]
        %v1000 = vld [vmem:[#allocation12 + $0x20] sm:$0xff]
        %v1001 = vld [vmem:[#allocation12 + $0x28] sm:$0xff]
        %v1002 = vld [vmem:[#allocation12 + $0x30] sm:$0xff]
        %v1003 = vld [vmem:[#allocation12 + $0x38] sm:$0xff]
        %v1004 = vld [vmem:[#allocation12 + $0x40] sm:$0xff]
        %v1005 = vld [vmem:[#allocation12 + $0x48] sm:$0xff]
        %v1006 = vld [vmem:[#allocation12 + $0x50] sm:$0xff]
        %v1007 = vld [vmem:[#allocation12 + $0x58] sm:$0xff]
        %v1008 = vld [vmem:[#allocation12 + $0x60] sm:$0xff]
        %v1009 = vld [vmem:[#allocation12 + $0x68] sm:$0xff]
        %v1010 = vld [vmem:[#allocation12 + $0x70] sm:$0xff]
        %v1011 = vld [vmem:[#allocation12 + $0x78] sm:$0xff]
        %v1012 = vld [vmem:[#allocation12 + $0x80] sm:$0xff]
        %v1013 = vld [vmem:[#allocation12 + $0x88] sm:$0xff]
        %v1014 = vld [vmem:[#allocation12 + $0x90] sm:$0xff]
        %v1015 = vld [vmem:[#allocation12 + $0x98] sm:$0xff]
        %v1016 = vld [vmem:[#allocation12 + $0xa0] sm:$0xff]
        %v1017 = vld [vmem:[#allocation12 + $0xa8] sm:$0xff]
        %v1018 = vld [vmem:[#allocation12 + $0xb0] sm:$0xff]
        %v1019 = vld [vmem:[#allocation12 + $0xb8] sm:$0xff]
        %v1020 = vld [vmem:[#allocation12 + $0xc0] sm:$0xff]
        %v1021 = vld [vmem:[#allocation12 + $0xc8] sm:$0xff]
        %v1022 = vld [vmem:[#allocation12 + $0xd0] sm:$0xff]
        %v1023 = vld [vmem:[#allocation12 + $0xd8] sm:$0xff]
        %v1024 = vld [vmem:[#allocation12 + $0xe0] sm:$0xff]
        %v1025 = vld [vmem:[#allocation12 + $0xe8] sm:$0xff]
        %v1026 = vld [vmem:[#allocation12 + $0xf0] sm:$0xff]
        %v1027 = vld [vmem:[#allocation12 + $0xf8] sm:$0xff]
        %v1060 = vunpack.c.l.b16 %v996
        %v1061 = vunpack.c.h.b16 %v996
        %v1062 = vunpack.c.l.b16 %v997
        %v1063 = vunpack.c.h.b16 %v997
        %v1064 = vunpack.c.l.b16 %v998
        %v1065 = vunpack.c.h.b16 %v998
        %v1066 = vunpack.c.l.b16 %v999
        %v1067 = vunpack.c.h.b16 %v999
        %v1068 = vunpack.c.l.b16 %v1000
        %v1069 = vunpack.c.h.b16 %v1000
        %v1070 = vunpack.c.l.b16 %v1001
        %v1071 = vunpack.c.h.b16 %v1001
        %v1072 = vunpack.c.l.b16 %v1002
        %v1073 = vunpack.c.h.b16 %v1002
        %v1074 = vunpack.c.l.b16 %v1003
        %v1075 = vunpack.c.h.b16 %v1003
        %v1076 = vunpack.c.l.b16 %v1004
        %v1077 = vunpack.c.h.b16 %v1004
        %v1078 = vunpack.c.l.b16 %v1005
        %v1079 = vunpack.c.h.b16 %v1005
        %v1080 = vunpack.c.l.b16 %v1006
        %v1081 = vunpack.c.h.b16 %v1006
        %v1082 = vunpack.c.l.b16 %v1007
        %v1083 = vunpack.c.h.b16 %v1007
        %v1084 = vunpack.c.l.b16 %v1008
        %v1085 = vunpack.c.h.b16 %v1008
        %v1086 = vunpack.c.l.b16 %v1009
        %v1087 = vunpack.c.h.b16 %v1009
        %v1088 = vunpack.c.l.b16 %v1010
        %v1089 = vunpack.c.h.b16 %v1010
        %v1090 = vunpack.c.l.b16 %v1011
        %v1091 = vunpack.c.h.b16 %v1011
        %v1092 = vunpack.c.l.b16 %v1012
        %v1093 = vunpack.c.h.b16 %v1012
        %v1094 = vunpack.c.l.b16 %v1013
        %v1095 = vunpack.c.h.b16 %v1013
        %v1096 = vunpack.c.l.b16 %v1014
        %v1097 = vunpack.c.h.b16 %v1014
        %v1098 = vunpack.c.l.b16 %v1015
        %v1099 = vunpack.c.h.b16 %v1015
        %v1100 = vunpack.c.l.b16 %v1016
        %v1101 = vunpack.c.h.b16 %v1016
        %v1102 = vunpack.c.l.b16 %v1017
        %v1103 = vunpack.c.h.b16 %v1017
        %v1104 = vunpack.c.l.b16 %v1018
        %v1105 = vunpack.c.h.b16 %v1018
        %v1106 = vunpack.c.l.b16 %v1019
        %v1107 = vunpack.c.h.b16 %v1019
        %v1108 = vunpack.c.l.b16 %v1020
        %v1109 = vunpack.c.h.b16 %v1020
        %v1110 = vunpack.c.l.b16 %v1021
        %v1111 = vunpack.c.h.b16 %v1021
        %v1112 = vunpack.c.l.b16 %v1022
        %v1113 = vunpack.c.h.b16 %v1022
        %v1114 = vunpack.c.l.b16 %v1023
        %v1115 = vunpack.c.h.b16 %v1023
        %v1116 = vunpack.c.l.b16 %v1024
        %v1117 = vunpack.c.h.b16 %v1024
        %v1118 = vunpack.c.l.b16 %v1025
        %v1119 = vunpack.c.h.b16 %v1025
        %v1120 = vunpack.c.l.b16 %v1026
        %v1121 = vunpack.c.h.b16 %v1026
        %v1122 = vunpack.c.l.b16 %v1027
        %v1123 = vunpack.c.h.b16 %v1027
        %v1124 = vpack.c.b16 %v1062, %v1060
        %v1125 = vpack.c.b16 %v1063, %v1061
        %v1126 = vpack.c.b16 %v1066, %v1064
        %v1127 = vpack.c.b16 %v1067, %v1065
        %v1128 = vpack.c.b16 %v1070, %v1068
        %v1129 = vpack.c.b16 %v1071, %v1069
        %v1130 = vpack.c.b16 %v1074, %v1072
        %v1131 = vpack.c.b16 %v1075, %v1073
        %v1132 = vpack.c.b16 %v1078, %v1076
        %v1133 = vpack.c.b16 %v1079, %v1077
        %v1134 = vpack.c.b16 %v1082, %v1080
        %v1135 = vpack.c.b16 %v1083, %v1081
        %v1136 = vpack.c.b16 %v1086, %v1084
        %v1137 = vpack.c.b16 %v1087, %v1085
        %v1138 = vpack.c.b16 %v1090, %v1088
        %v1139 = vpack.c.b16 %v1091, %v1089
        %v1140 = vpack.c.b16 %v1094, %v1092
        %v1141 = vpack.c.b16 %v1095, %v1093
        %v1142 = vpack.c.b16 %v1098, %v1096
        %v1143 = vpack.c.b16 %v1099, %v1097
        %v1144 = vpack.c.b16 %v1102, %v1100
        %v1145 = vpack.c.b16 %v1103, %v1101
        %v1146 = vpack.c.b16 %v1106, %v1104
        %v1147 = vpack.c.b16 %v1107, %v1105
        %v1148 = vpack.c.b16 %v1110, %v1108
        %v1149 = vpack.c.b16 %v1111, %v1109
        %v1150 = vpack.c.b16 %v1114, %v1112
        %v1151 = vpack.c.b16 %v1115, %v1113
        %v1152 = vpack.c.b16 %v1118, %v1116
        %v1153 = vpack.c.b16 %v1119, %v1117
        %v1154 = vpack.c.b16 %v1122, %v1120
        %v1155 = vpack.c.b16 %v1123, %v1121
        %1188 = vmatprep.subr.bf16.mxu0 %v1125
        %1189 = vmatpush1.bf16.msra.mxu0 %v1124
        %1190 = vmatprep.subr.bf16.mxu0 %v1127
        %1191 = vmatpush1.bf16.msra.mxu0 %v1126
        %1192 = vmatprep.subr.bf16.mxu0 %v1129
        %1193 = vmatpush1.bf16.msra.mxu0 %v1128
        %1194 = vmatprep.subr.bf16.mxu0 %v1131
        %1195 = vmatpush1.bf16.msra.mxu0 %v1130
        %1196 = vmatprep.subr.bf16.mxu0 %v1133
        %1197 = vmatpush1.bf16.msra.mxu0 %v1132
        %1198 = vmatprep.subr.bf16.mxu0 %v1135
        %1199 = vmatpush1.bf16.msra.mxu0 %v1134
        %1200 = vmatprep.subr.bf16.mxu0 %v1137
        %1201 = vmatpush1.bf16.msra.mxu0 %v1136
        %1202 = vmatprep.subr.bf16.mxu0 %v1139
        %1203 = vmatpush1.bf16.msra.mxu0 %v1138
        %1204 = vmatprep.subr.bf16.mxu0 %v1141
        %1205 = vmatpush1.bf16.msra.mxu0 %v1140
        %1206 = vmatprep.subr.bf16.mxu0 %v1143
        %1207 = vmatpush1.bf16.msra.mxu0 %v1142
        %1208 = vmatprep.subr.bf16.mxu0 %v1145
        %1209 = vmatpush1.bf16.msra.mxu0 %v1144
        %1210 = vmatprep.subr.bf16.mxu0 %v1147
        %1211 = vmatpush1.bf16.msra.mxu0 %v1146
        %1212 = vmatprep.subr.bf16.mxu0 %v1149
        %1213 = vmatpush1.bf16.msra.mxu0 %v1148
        %1214 = vmatprep.subr.bf16.mxu0 %v1151
        %1215 = vmatpush1.bf16.msra.mxu0 %v1150
        %1216 = vmatprep.subr.bf16.mxu0 %v1153
        %1217 = vmatpush1.bf16.msra.mxu0 %v1152
        %1218 = vmatprep.subr.bf16.mxu0 %v1155
        %1219 = vmatpush1.bf16.msra.mxu0 %v1154
        %1220 = vmatprep.mubr.bf16.mxu0 %v529
        %1221 = vmatmul.mubr.bf16.gmra.mrb[0].mxu0 %v528
        %v1222 = vpop.f32.mrb[0].mxu0
        %v1223 = vadd.f32 0.0, %v1222
        %v1224 = vpop.f32.mrb[0].mxu0
        %v1225 = vadd.f32 0.0, %v1224
        %v1226 = vpop.f32.mrb[0].mxu0
        %v1227 = vpop.f32.mrb[0].mxu0
        %1228 = vdwg.mxu0
        %v1229 = vpack.c.bf16 %v757, %v757
        %v1230 = vpack.c.bf16 %v759, %v759
        %v1231 = vpack.c.bf16 %v990, %v990
        %v1232 = vpack.c.bf16 %v992, %v992
        %v1233 = vpack.c.bf16 %v1223, %v1223
        %v1234 = vpack.c.bf16 %v1225, %v1225
        %vm1235 = vcmask 261120
        %v1237 = vsel %vm1235, %v1229, 0
        %v1240 = vsel %vm1235, %v1231, 0
        %1242 = vmatprep.subr.bf16.mxu0 0
        %1243 = vmatpush1.bf16.xpose.msra.mxu0 %v1240
        %1244 = vmatprep.subr.bf16.mxu0 0
        %1245 = vmatpush1.bf16.xpose.msra.mxu0 0
        %1246 = vmatprep.subr.bf16.mxu0 0
        %1247 = vmatpush1.bf16.xpose.msra.mxu0 0
        %1248 = vmatprep.subr.bf16.mxu0 0
        %1249 = vmatpush1.bf16.xpose.msra.mxu0 0
        %1250 = vmatprep.subr.bf16.mxu0 0
        %1251 = vmatpush1.bf16.xpose.msra.mxu0 0
        %1252 = vmatprep.subr.bf16.mxu0 0
        %1253 = vmatpush1.bf16.xpose.msra.mxu0 0
        %1254 = vmatprep.subr.bf16.mxu0 0
        %1255 = vmatpush1.bf16.xpose.msra.mxu0 0
        %1256 = vmatprep.subr.bf16.mxu0 0
        %1257 = vmatpush1.bf16.xpose.msra.mxu0 0
        %1258 = vmatprep.subr.bf16.mxu0 0
        %1259 = vmatpush1.bf16.xpose.msra.mxu0 0
        %1260 = vmatprep.subr.bf16.mxu0 0
        %1261 = vmatpush1.bf16.xpose.msra.mxu0 0
        %1262 = vmatprep.subr.bf16.mxu0 0
        %1263 = vmatpush1.bf16.xpose.msra.mxu0 0
        %1264 = vmatprep.subr.bf16.mxu0 0
        %1265 = vmatpush1.bf16.xpose.msra.mxu0 0
        %1266 = vmatprep.subr.bf16.mxu0 0
        %1267 = vmatpush1.bf16.xpose.msra.mxu0 0
        %1268 = vmatprep.subr.bf16.mxu0 0
        %1269 = vmatpush1.bf16.xpose.msra.mxu0 0
        %1270 = vmatprep.subr.bf16.mxu0 0
        %1271 = vmatpush1.bf16.xpose.msra.mxu0 0
        %1272 = vmatprep.subr.bf16.mxu0 0
        %1273 = vmatpush1.bf16.xpose.msra.mxu0 0
        %1274 = vmatprep.mubr.bf16.mxu0 0
        %1275 = vmatmul.mubr.bf16.gmra.mrb[0].mxu0 %v1237
        %v1276 = vpop.f32.mrb[0].mxu0
        %v1277 = vadd.f32 0.0, %v1276
        %v1278 = vpop.f32.mrb[0].mxu0
        %v1279 = vpop.f32.mrb[0].mxu0
        %v1280 = vpop.f32.mrb[0].mxu0
        %1281 = vdwg.mxu0
        %vm1282 = vcmask 64512
        %v1283 = vsel %vm1282, %v1277, -inf
        %1284 = vmax.xlane.f32.xlu0 %v1283
        %v1285 = vpop.xlane.xlu0 %1284
        %v1286 = vsub.f32 %v1277, %v1285
        %v1287 = vmul.f32 %v1286, 1.442695
        %v1288 = vpow.pop %v1287
        %v1289 = vsel %vm1282, %v1288, 0.0
        %1290 = vadd.xlane.f32.xlu0 %v1289
        %v1291 = vpop.xlane.xlu0 %1290
        %v1292 = vrcp.pop %v1291
        %v1293 = vmul.f32 %v1288, %v1292
        %1294 = vst.msk [vmem:[%s516] sm:$0xff] %vm1282, %v1293
        %v1295 = vpack.c.bf16 %v1293, %v1293
        %v1297 = vsel %vm1282, %v1295, 0
        %vm1299 = vcmask 1043456
        %v1301 = vsel %vm1299, %v1233, 0
        %1303 = vmatprep.subr.bf16.mxu0 0
        %1304 = vmatpush1.bf16.msra.mxu0 %v1301
        %1305 = vmatprep.subr.bf16.mxu0 0
        %1306 = vmatpush1.bf16.msra.mxu0 0
        %1307 = vmatprep.subr.bf16.mxu0 0
        %1308 = vmatpush1.bf16.msra.mxu0 0
        %1309 = vmatprep.subr.bf16.mxu0 0
        %1310 = vmatpush1.bf16.msra.mxu0 0
        %1311 = vmatprep.subr.bf16.mxu0 0
        %1312 = vmatpush1.bf16.msra.mxu0 0
        %1313 = vmatprep.subr.bf16.mxu0 0
        %1314 = vmatpush1.bf16.msra.mxu0 0
        %1315 = vmatprep.subr.bf16.mxu0 0
        %1316 = vmatpush1.bf16.msra.mxu0 0
        %1317 = vmatprep.subr.bf16.mxu0 0
        %1318 = vmatpush1.bf16.msra.mxu0 0
        %1319 = vmatprep.subr.bf16.mxu0 0
        %1320 = vmatpush1.bf16.msra.mxu0 0
        %1321 = vmatprep.subr.bf16.mxu0 0
        %1322 = vmatpush1.bf16.msra.mxu0 0
        %1323 = vmatprep.subr.bf16.mxu0 0
        %1324 = vmatpush1.bf16.msra.mxu0 0
        %1325 = vmatprep.subr.bf16.mxu0 0
        %1326 = vmatpush1.bf16.msra.mxu0 0
        %1327 = vmatprep.subr.bf16.mxu0 0
        %1328 = vmatpush1.bf16.msra.mxu0 0
        %1329 = vmatprep.subr.bf16.mxu0 0
        %1330 = vmatpush1.bf16.msra.mxu0 0
        %1331 = vmatprep.subr.bf16.mxu0 0
        %1332 = vmatpush1.bf16.msra.mxu0 0
        %1333 = vmatprep.subr.bf16.mxu0 0
        %1334 = vmatpush1.bf16.msra.mxu0 0
        %1335 = vmatprep.mubr.bf16.mxu0 0
        %1336 = vmatmul.mubr.bf16.gmra.mrb[0].mxu0 %v1297
        %v1337 = vpop.f32.mrb[0].mxu0
        %v1338 = vadd.f32 0.0, %v1337
        %v1339 = vpop.f32.mrb[0].mxu0
        %v1340 = vpop.f32.mrb[0].mxu0
        %v1341 = vpop.f32.mrb[0].mxu0
        %1342 = vdwg.mxu0
        %1343 = vst.msk [vmem:[#allocation2] sm:$0xff] %vm1235, %v1338
        %1345 = vrot.lane.b32.xlu0 %v1229, 96
        %v1346 = vpop.permute.xlu0 %1345
        %1348 = vrot.lane.b32.xlu0 %v1231, 96
        %v1349 = vpop.permute.xlu0 %1348
        %v1351 = vsel %vm1235, %v1346, 0
        %v1354 = vsel %vm1235, %v1349, 0
        %1356 = vmatprep.subr.bf16.mxu0 0
        %1357 = vmatpush1.bf16.xpose.msra.mxu0 %v1354
        %1358 = vmatprep.subr.bf16.mxu0 0
        %1359 = vmatpush1.bf16.xpose.msra.mxu0 0
        %1360 = vmatprep.subr.bf16.mxu0 0
        %1361 = vmatpush1.bf16.xpose.msra.mxu0 0
        %1362 = vmatprep.subr.bf16.mxu0 0
        %1363 = vmatpush1.bf16.xpose.msra.mxu0 0
        %1364 = vmatprep.subr.bf16.mxu0 0
        %1365 = vmatpush1.bf16.xpose.msra.mxu0 0
        %1366 = vmatprep.subr.bf16.mxu0 0
        %1367 = vmatpush1.bf16.xpose.msra.mxu0 0
        %1368 = vmatprep.subr.bf16.mxu0 0
        %1369 = vmatpush1.bf16.xpose.msra.mxu0 0
        %1370 = vmatprep.subr.bf16.mxu0 0
        %1371 = vmatpush1.bf16.xpose.msra.mxu0 0
        %1372 = vmatprep.subr.bf16.mxu0 0
        %1373 = vmatpush1.bf16.xpose.msra.mxu0 0
        %1374 = vmatprep.subr.bf16.mxu0 0
        %1375 = vmatpush1.bf16.xpose.msra.mxu0 0
        %1376 = vmatprep.subr.bf16.mxu0 0
        %1377 = vmatpush1.bf16.xpose.msra.mxu0 0
        %1378 = vmatprep.subr.bf16.mxu0 0
        %1379 = vmatpush1.bf16.xpose.msra.mxu0 0
        %1380 = vmatprep.subr.bf16.mxu0 0
        %1381 = vmatpush1.bf16.xpose.msra.mxu0 0
        %1382 = vmatprep.subr.bf16.mxu0 0
        %1383 = vmatpush1.bf16.xpose.msra.mxu0 0
        %1384 = vmatprep.subr.bf16.mxu0 0
        %1385 = vmatpush1.bf16.xpose.msra.mxu0 0
        %1386 = vmatprep.subr.bf16.mxu0 0
        %1387 = vmatpush1.bf16.xpose.msra.mxu0 0
        %1388 = vmatprep.mubr.bf16.mxu0 0
        %1389 = vmatmul.mubr.bf16.gmra.mrb[0].mxu0 %v1351
        %v1390 = vpop.f32.mrb[0].mxu0
        %v1391 = vadd.f32 0.0, %v1390
        %v1392 = vpop.f32.mrb[0].mxu0
        %v1393 = vpop.f32.mrb[0].mxu0
        %v1394 = vpop.f32.mrb[0].mxu0
        %1395 = vdwg.mxu0
        %v1396 = vsel %vm1282, %v1391, -inf
        %1397 = vmax.xlane.f32.xlu0 %v1396
        %v1398 = vpop.xlane.xlu0 %1397
        %v1399 = vsub.f32 %v1391, %v1398
        %v1400 = vmul.f32 %v1399, 1.442695
        %v1401 = vpow.pop %v1400
        %v1402 = vsel %vm1282, %v1401, 0.0
        %1403 = vadd.xlane.f32.xlu0 %v1402
        %v1404 = vpop.xlane.xlu0 %1403
        %v1405 = vrcp.pop %v1404
        %v1406 = vmul.f32 %v1401, %v1405
        %1408 = vrot.lane.b32.xlu0 %v1406, 8
        %v1409 = vpop.permute.xlu0 %1408
        %vm1411 = vcmask 130112
        %1412 = vst.msk [vmem:[%s516] sm:$0xff] %vm1411, %v1409
        %v1413 = vpack.c.bf16 %v1406, %v1406
        %1415 = vrot.lane.b32.xlu0 %v1233, 96
        %v1416 = vpop.permute.xlu0 %1415
        %v1418 = vsel %vm1282, %v1413, 0
        %v1421 = vsel %vm1299, %v1416, 0
        %1423 = vmatprep.subr.bf16.mxu0 0
        %1424 = vmatpush1.bf16.msra.mxu0 %v1421
        %1425 = vmatprep.subr.bf16.mxu0 0
        %1426 = vmatpush1.bf16.msra.mxu0 0
        %1427 = vmatprep.subr.bf16.mxu0 0
        %1428 = vmatpush1.bf16.msra.mxu0 0
        %1429 = vmatprep.subr.bf16.mxu0 0
        %1430 = vmatpush1.bf16.msra.mxu0 0
        %1431 = vmatprep.subr.bf16.mxu0 0
        %1432 = vmatpush1.bf16.msra.mxu0 0
        %1433 = vmatprep.subr.bf16.mxu0 0
        %1434 = vmatpush1.bf16.msra.mxu0 0
        %1435 = vmatprep.subr.bf16.mxu0 0
        %1436 = vmatpush1.bf16.msra.mxu0 0
        %1437 = vmatprep.subr.bf16.mxu0 0
        %1438 = vmatpush1.bf16.msra.mxu0 0
        %1439 = vmatprep.subr.bf16.mxu0 0
        %1440 = vmatpush1.bf16.msra.mxu0 0
        %1441 = vmatprep.subr.bf16.mxu0 0
        %1442 = vmatpush1.bf16.msra.mxu0 0
        %1443 = vmatprep.subr.bf16.mxu0 0
        %1444 = vmatpush1.bf16.msra.mxu0 0
        %1445 = vmatprep.subr.bf16.mxu0 0
        %1446 = vmatpush1.bf16.msra.mxu0 0
        %1447 = vmatprep.subr.bf16.mxu0 0
        %1448 = vmatpush1.bf16.msra.mxu0 0
        %1449 = vmatprep.subr.bf16.mxu0 0
        %1450 = vmatpush1.bf16.msra.mxu0 0
        %1451 = vmatprep.subr.bf16.mxu0 0
        %1452 = vmatpush1.bf16.msra.mxu0 0
        %1453 = vmatprep.subr.bf16.mxu0 0
        %1454 = vmatpush1.bf16.msra.mxu0 0
        %1455 = vmatprep.mubr.bf16.mxu0 0
        %1456 = vmatmul.mubr.bf16.gmra.mrb[0].mxu0 %v1418
        %v1457 = vpop.f32.mrb[0].mxu0
        %v1458 = vadd.f32 0.0, %v1457
        %v1459 = vpop.f32.mrb[0].mxu0
        %v1460 = vpop.f32.mrb[0].mxu0
        %v1461 = vpop.f32.mrb[0].mxu0
        %1462 = vdwg.mxu0
        %1464 = vrot.lane.b32.xlu0 %v1458, 32
        %v1465 = vpop.permute.xlu0 %1464
        %vm1467 = vcmask 523520
        %1468 = vst.msk [vmem:[#allocation2] sm:$0xff] %vm1467, %v1465
        %1469 = vrot.lane.b32.xlu0 %v1229, 64
        %v1470 = vpop.permute.xlu0 %1469
        %1471 = vrot.lane.b32.xlu0 %v1231, 64
        %v1472 = vpop.permute.xlu0 %1471
        %v1474 = vsel %vm1235, %v1470, 0
        %v1477 = vsel %vm1235, %v1472, 0
        %1479 = vmatprep.subr.bf16.mxu0 0
        %1480 = vmatpush1.bf16.xpose.msra.mxu0 %v1477
        %1481 = vmatprep.subr.bf16.mxu0 0
        %1482 = vmatpush1.bf16.xpose.msra.mxu0 0
        %1483 = vmatprep.subr.bf16.mxu0 0
        %1484 = vmatpush1.bf16.xpose.msra.mxu0 0
        %1485 = vmatprep.subr.bf16.mxu0 0
        %1486 = vmatpush1.bf16.xpose.msra.mxu0 0
        %1487 = vmatprep.subr.bf16.mxu0 0
        %1488 = vmatpush1.bf16.xpose.msra.mxu0 0
        %1489 = vmatprep.subr.bf16.mxu0 0
        %1490 = vmatpush1.bf16.xpose.msra.mxu0 0
        %1491 = vmatprep.subr.bf16.mxu0 0
        %1492 = vmatpush1.bf16.xpose.msra.mxu0 0
        %1493 = vmatprep.subr.bf16.mxu0 0
        %1494 = vmatpush1.bf16.xpose.msra.mxu0 0
        %1495 = vmatprep.subr.bf16.mxu0 0
        %1496 = vmatpush1.bf16.xpose.msra.mxu0 0
        %1497 = vmatprep.subr.bf16.mxu0 0
        %1498 = vmatpush1.bf16.xpose.msra.mxu0 0
        %1499 = vmatprep.subr.bf16.mxu0 0
        %1500 = vmatpush1.bf16.xpose.msra.mxu0 0
        %1501 = vmatprep.subr.bf16.mxu0 0
        %1502 = vmatpush1.bf16.xpose.msra.mxu0 0
        %1503 = vmatprep.subr.bf16.mxu0 0
        %1504 = vmatpush1.bf16.xpose.msra.mxu0 0
        %1505 = vmatprep.subr.bf16.mxu0 0
        %1506 = vmatpush1.bf16.xpose.msra.mxu0 0
        %1507 = vmatprep.subr.bf16.mxu0 0
        %1508 = vmatpush1.bf16.xpose.msra.mxu0 0
        %1509 = vmatprep.subr.bf16.mxu0 0
        %1510 = vmatpush1.bf16.xpose.msra.mxu0 0
        %1511 = vmatprep.mubr.bf16.mxu0 0
        %1512 = vmatmul.mubr.bf16.gmra.mrb[0].mxu0 %v1474
        %v1513 = vpop.f32.mrb[0].mxu0
        %v1514 = vadd.f32 0.0, %v1513
        %v1515 = vpop.f32.mrb[0].mxu0
        %v1516 = vpop.f32.mrb[0].mxu0
        %v1517 = vpop.f32.mrb[0].mxu0
        %1518 = vdwg.mxu0
        %v1519 = vsel %vm1282, %v1514, -inf
        %1520 = vmax.xlane.f32.xlu0 %v1519
        %v1521 = vpop.xlane.xlu0 %1520
        %v1522 = vsub.f32 %v1514, %v1521
        %v1523 = vmul.f32 %v1522, 1.442695
        %v1524 = vpow.pop %v1523
        %v1525 = vsel %vm1282, %v1524, 0.0
        %1526 = vadd.xlane.f32.xlu0 %v1525
        %v1527 = vpop.xlane.xlu0 %1526
        %v1528 = vrcp.pop %v1527
        %v1529 = vmul.f32 %v1524, %v1528
        %1531 = vrot.lane.b32.xlu0 %v1529, 16
        %v1532 = vpop.permute.xlu0 %1531
        %vm1534 = vcmask 195712
        %1535 = vst.msk [vmem:[%s516] sm:$0xff] %vm1534, %v1532
        %v1536 = vpack.c.bf16 %v1529, %v1529
        %1537 = vrot.lane.b32.xlu0 %v1233, 64
        %v1538 = vpop.permute.xlu0 %1537
        %v1540 = vsel %vm1282, %v1536, 0
        %v1543 = vsel %vm1299, %v1538, 0
        %1545 = vmatprep.subr.bf16.mxu0 0
        %1546 = vmatpush1.bf16.msra.mxu0 %v1543
        %1547 = vmatprep.subr.bf16.mxu0 0
        %1548 = vmatpush1.bf16.msra.mxu0 0
        %1549 = vmatprep.subr.bf16.mxu0 0
        %1550 = vmatpush1.bf16.msra.mxu0 0
        %1551 = vmatprep.subr.bf16.mxu0 0
        %1552 = vmatpush1.bf16.msra.mxu0 0
        %1553 = vmatprep.subr.bf16.mxu0 0
        %1554 = vmatpush1.bf16.msra.mxu0 0
        %1555 = vmatprep.subr.bf16.mxu0 0
        %1556 = vmatpush1.bf16.msra.mxu0 0
        %1557 = vmatprep.subr.bf16.mxu0 0
        %1558 = vmatpush1.bf16.msra.mxu0 0
        %1559 = vmatprep.subr.bf16.mxu0 0
        %1560 = vmatpush1.bf16.msra.mxu0 0
        %1561 = vmatprep.subr.bf16.mxu0 0
        %1562 = vmatpush1.bf16.msra.mxu0 0
        %1563 = vmatprep.subr.bf16.mxu0 0
        %1564 = vmatpush1.bf16.msra.mxu0 0
        %1565 = vmatprep.subr.bf16.mxu0 0
        %1566 = vmatpush1.bf16.msra.mxu0 0
        %1567 = vmatprep.subr.bf16.mxu0 0
        %1568 = vmatpush1.bf16.msra.mxu0 0
        %1569 = vmatprep.subr.bf16.mxu0 0
        %1570 = vmatpush1.bf16.msra.mxu0 0
        %1571 = vmatprep.subr.bf16.mxu0 0
        %1572 = vmatpush1.bf16.msra.mxu0 0
        %1573 = vmatprep.subr.bf16.mxu0 0
        %1574 = vmatpush1.bf16.msra.mxu0 0
        %1575 = vmatprep.subr.bf16.mxu0 0
        %1576 = vmatpush1.bf16.msra.mxu0 0
        %1577 = vmatprep.mubr.bf16.mxu0 0
        %1578 = vmatmul.mubr.bf16.gmra.mrb[0].mxu0 %v1540
        %v1579 = vpop.f32.mrb[0].mxu0
        %v1580 = vadd.f32 0.0, %v1579
        %v1581 = vpop.f32.mrb[0].mxu0
        %v1582 = vpop.f32.mrb[0].mxu0
        %v1583 = vpop.f32.mrb[0].mxu0
        %1584 = vdwg.mxu0
        %1586 = vrot.lane.b32.xlu0 %v1580, 64
        %v1587 = vpop.permute.xlu0 %1586
        %vm1589 = vcmask 785920
        %1590 = vst.msk [vmem:[#allocation2] sm:$0xff] %vm1589, %v1587
        %1591 = vrot.lane.b32.xlu0 %v1229, 32
        %v1592 = vpop.permute.xlu0 %1591
        %1593 = vrot.lane.b32.xlu0 %v1231, 32
        %v1594 = vpop.permute.xlu0 %1593
        %v1596 = vsel %vm1235, %v1592, 0
        %v1599 = vsel %vm1235, %v1594, 0
        %1601 = vmatprep.subr.bf16.mxu0 0
        %1602 = vmatpush1.bf16.xpose.msra.mxu0 %v1599
        %1603 = vmatprep.subr.bf16.mxu0 0
        %1604 = vmatpush1.bf16.xpose.msra.mxu0 0
        %1605 = vmatprep.subr.bf16.mxu0 0
        %1606 = vmatpush1.bf16.xpose.msra.mxu0 0
        %1607 = vmatprep.subr.bf16.mxu0 0
        %1608 = vmatpush1.bf16.xpose.msra.mxu0 0
        %1609 = vmatprep.subr.bf16.mxu0 0
        %1610 = vmatpush1.bf16.xpose.msra.mxu0 0
        %1611 = vmatprep.subr.bf16.mxu0 0
        %1612 = vmatpush1.bf16.xpose.msra.mxu0 0
        %1613 = vmatprep.subr.bf16.mxu0 0
        %1614 = vmatpush1.bf16.xpose.msra.mxu0 0
        %1615 = vmatprep.subr.bf16.mxu0 0
        %1616 = vmatpush1.bf16.xpose.msra.mxu0 0
        %1617 = vmatprep.subr.bf16.mxu0 0
        %1618 = vmatpush1.bf16.xpose.msra.mxu0 0
        %1619 = vmatprep.subr.bf16.mxu0 0
        %1620 = vmatpush1.bf16.xpose.msra.mxu0 0
        %1621 = vmatprep.subr.bf16.mxu0 0
        %1622 = vmatpush1.bf16.xpose.msra.mxu0 0
        %1623 = vmatprep.subr.bf16.mxu0 0
        %1624 = vmatpush1.bf16.xpose.msra.mxu0 0
        %1625 = vmatprep.subr.bf16.mxu0 0
        %1626 = vmatpush1.bf16.xpose.msra.mxu0 0
        %1627 = vmatprep.subr.bf16.mxu0 0
        %1628 = vmatpush1.bf16.xpose.msra.mxu0 0
        %1629 = vmatprep.subr.bf16.mxu0 0
        %1630 = vmatpush1.bf16.xpose.msra.mxu0 0
        %1631 = vmatprep.subr.bf16.mxu0 0
        %1632 = vmatpush1.bf16.xpose.msra.mxu0 0
        %1633 = vmatprep.mubr.bf16.mxu0 0
        %1634 = vmatmul.mubr.bf16.gmra.mrb[0].mxu0 %v1596
        %v1635 = vpop.f32.mrb[0].mxu0
        %v1636 = vadd.f32 0.0, %v1635
        %v1637 = vpop.f32.mrb[0].mxu0
        %v1638 = vpop.f32.mrb[0].mxu0
        %v1639 = vpop.f32.mrb[0].mxu0
        %1640 = vdwg.mxu0
        %v1641 = vsel %vm1282, %v1636, -inf
        %1642 = vmax.xlane.f32.xlu0 %v1641
        %v1643 = vpop.xlane.xlu0 %1642
        %v1644 = vsub.f32 %v1636, %v1643
        %v1645 = vmul.f32 %v1644, 1.442695
        %v1646 = vpow.pop %v1645
        %v1647 = vsel %vm1282, %v1646, 0.0
        %1648 = vadd.xlane.f32.xlu0 %v1647
        %v1649 = vpop.xlane.xlu0 %1648
        %v1650 = vrcp.pop %v1649
        %v1651 = vmul.f32 %v1646, %v1650
        %1653 = vrot.lane.b32.xlu0 %v1651, 24
        %v1654 = vpop.permute.xlu0 %1653
        %vm1656 = vcmask 261312
        %1657 = vst.msk [vmem:[%s516] sm:$0xff] %vm1656, %v1654
        %v1658 = vpack.c.bf16 %v1651, %v1651
        %1659 = vrot.lane.b32.xlu0 %v1233, 32
        %v1660 = vpop.permute.xlu0 %1659
        %v1662 = vsel %vm1282, %v1658, 0
        %v1665 = vsel %vm1299, %v1660, 0
        %1667 = vmatprep.subr.bf16.mxu0 0
        %1668 = vmatpush1.bf16.msra.mxu0 %v1665
        %1669 = vmatprep.subr.bf16.mxu0 0
        %1670 = vmatpush1.bf16.msra.mxu0 0
        %1671 = vmatprep.subr.bf16.mxu0 0
        %1672 = vmatpush1.bf16.msra.mxu0 0
        %1673 = vmatprep.subr.bf16.mxu0 0
        %1674 = vmatpush1.bf16.msra.mxu0 0
        %1675 = vmatprep.subr.bf16.mxu0 0
        %1676 = vmatpush1.bf16.msra.mxu0 0
        %1677 = vmatprep.subr.bf16.mxu0 0
        %1678 = vmatpush1.bf16.msra.mxu0 0
        %1679 = vmatprep.subr.bf16.mxu0 0
        %1680 = vmatpush1.bf16.msra.mxu0 0
        %1681 = vmatprep.subr.bf16.mxu0 0
        %1682 = vmatpush1.bf16.msra.mxu0 0
        %1683 = vmatprep.subr.bf16.mxu0 0
        %1684 = vmatpush1.bf16.msra.mxu0 0
        %1685 = vmatprep.subr.bf16.mxu0 0
        %1686 = vmatpush1.bf16.msra.mxu0 0
        %1687 = vmatprep.subr.bf16.mxu0 0
        %1688 = vmatpush1.bf16.msra.mxu0 0
        %1689 = vmatprep.subr.bf16.mxu0 0
        %1690 = vmatpush1.bf16.msra.mxu0 0
        %1691 = vmatprep.subr.bf16.mxu0 0
        %1692 = vmatpush1.bf16.msra.mxu0 0
        %1693 = vmatprep.subr.bf16.mxu0 0
        %1694 = vmatpush1.bf16.msra.mxu0 0
        %1695 = vmatprep.subr.bf16.mxu0 0
        %1696 = vmatpush1.bf16.msra.mxu0 0
        %1697 = vmatprep.subr.bf16.mxu0 0
        %1698 = vmatpush1.bf16.msra.mxu0 0
        %1699 = vmatprep.mubr.bf16.mxu0 0
        %1700 = vmatmul.mubr.bf16.gmra.mrb[0].mxu0 %v1662
        %v1701 = vpop.f32.mrb[0].mxu0
        %v1702 = vadd.f32 0.0, %v1701
        %v1703 = vpop.f32.mrb[0].mxu0
        %v1704 = vpop.f32.mrb[0].mxu0
        %v1705 = vpop.f32.mrb[0].mxu0
        %1706 = vdwg.mxu0
        %1708 = vrot.lane.b32.xlu0 %v1702, 96
        %v1709 = vpop.permute.xlu0 %1708
        %vm1711 = vcmask 1048320
        %1712 = vst.msk [vmem:[#allocation2] sm:$0xff] %vm1711, %v1709
        %v1714 = vsel %vm1235, %v1230, 0
        %v1717 = vsel %vm1235, %v1232, 0
        %1719 = vmatprep.subr.bf16.mxu0 0
        %1720 = vmatpush1.bf16.xpose.msra.mxu0 %v1717
        %1721 = vmatprep.subr.bf16.mxu0 0
        %1722 = vmatpush1.bf16.xpose.msra.mxu0 0
        %1723 = vmatprep.subr.bf16.mxu0 0
        %1724 = vmatpush1.bf16.xpose.msra.mxu0 0
        %1725 = vmatprep.subr.bf16.mxu0 0
        %1726 = vmatpush1.bf16.xpose.msra.mxu0 0
        %1727 = vmatprep.subr.bf16.mxu0 0
        %1728 = vmatpush1.bf16.xpose.msra.mxu0 0
        %1729 = vmatprep.subr.bf16.mxu0 0
        %1730 = vmatpush1.bf16.xpose.msra.mxu0 0
        %1731 = vmatprep.subr.bf16.mxu0 0
        %1732 = vmatpush1.bf16.xpose.msra.mxu0 0
        %1733 = vmatprep.subr.bf16.mxu0 0
        %1734 = vmatpush1.bf16.xpose.msra.mxu0 0
        %1735 = vmatprep.subr.bf16.mxu0 0
        %1736 = vmatpush1.bf16.xpose.msra.mxu0 0
        %1737 = vmatprep.subr.bf16.mxu0 0
        %1738 = vmatpush1.bf16.xpose.msra.mxu0 0
        %1739 = vmatprep.subr.bf16.mxu0 0
        %1740 = vmatpush1.bf16.xpose.msra.mxu0 0
        %1741 = vmatprep.subr.bf16.mxu0 0
        %1742 = vmatpush1.bf16.xpose.msra.mxu0 0
        %1743 = vmatprep.subr.bf16.mxu0 0
        %1744 = vmatpush1.bf16.xpose.msra.mxu0 0
        %1745 = vmatprep.subr.bf16.mxu0 0
        %1746 = vmatpush1.bf16.xpose.msra.mxu0 0
        %1747 = vmatprep.subr.bf16.mxu0 0
        %1748 = vmatpush1.bf16.xpose.msra.mxu0 0
        %1749 = vmatprep.subr.bf16.mxu0 0
        %1750 = vmatpush1.bf16.xpose.msra.mxu0 0
        %1751 = vmatprep.mubr.bf16.mxu0 0
        %1752 = vmatmul.mubr.bf16.gmra.mrb[0].mxu0 %v1714
        %v1753 = vpop.f32.mrb[0].mxu0
        %v1754 = vadd.f32 0.0, %v1753
        %v1755 = vpop.f32.mrb[0].mxu0
        %v1756 = vpop.f32.mrb[0].mxu0
        %v1757 = vpop.f32.mrb[0].mxu0
        %1758 = vdwg.mxu0
        %v1759 = vsel %vm1282, %v1754, -inf
        %1760 = vmax.xlane.f32.xlu0 %v1759
        %v1761 = vpop.xlane.xlu0 %1760
        %v1762 = vsub.f32 %v1754, %v1761
        %v1763 = vmul.f32 %v1762, 1.442695
        %v1764 = vpow.pop %v1763
        %v1765 = vsel %vm1282, %v1764, 0.0
        %1766 = vadd.xlane.f32.xlu0 %v1765
        %v1767 = vpop.xlane.xlu0 %1766
        %v1768 = vrcp.pop %v1767
        %v1769 = vmul.f32 %v1764, %v1768
        %1771 = vrot.lane.b32.xlu0 %v1769, 32
        %v1772 = vpop.permute.xlu0 %1771
        %vm1774 = vcmask 326912
        %1775 = vst.msk [vmem:[%s516] sm:$0xff] %vm1774, %v1772
        %v1776 = vpack.c.bf16 %v1769, %v1769
        %v1778 = vsel %vm1282, %v1776, 0
        %v1781 = vsel %vm1299, %v1234, 0
        %1783 = vmatprep.subr.bf16.mxu0 0
        %1784 = vmatpush1.bf16.msra.mxu0 %v1781
        %1785 = vmatprep.subr.bf16.mxu0 0
        %1786 = vmatpush1.bf16.msra.mxu0 0
        %1787 = vmatprep.subr.bf16.mxu0 0
        %1788 = vmatpush1.bf16.msra.mxu0 0
        %1789 = vmatprep.subr.bf16.mxu0 0
        %1790 = vmatpush1.bf16.msra.mxu0 0
        %1791 = vmatprep.subr.bf16.mxu0 0
        %1792 = vmatpush1.bf16.msra.mxu0 0
        %1793 = vmatprep.subr.bf16.mxu0 0
        %1794 = vmatpush1.bf16.msra.mxu0 0
        %1795 = vmatprep.subr.bf16.mxu0 0
        %1796 = vmatpush1.bf16.msra.mxu0 0
        %1797 = vmatprep.subr.bf16.mxu0 0
        %1798 = vmatpush1.bf16.msra.mxu0 0
        %1799 = vmatprep.subr.bf16.mxu0 0
        %1800 = vmatpush1.bf16.msra.mxu0 0
        %1801 = vmatprep.subr.bf16.mxu0 0
        %1802 = vmatpush1.bf16.msra.mxu0 0
        %1803 = vmatprep.subr.bf16.mxu0 0
        %1804 = vmatpush1.bf16.msra.mxu0 0
        %1805 = vmatprep.subr.bf16.mxu0 0
        %1806 = vmatpush1.bf16.msra.mxu0 0
        %1807 = vmatprep.subr.bf16.mxu0 0
        %1808 = vmatpush1.bf16.msra.mxu0 0
        %1809 = vmatprep.subr.bf16.mxu0 0
        %1810 = vmatpush1.bf16.msra.mxu0 0
        %1811 = vmatprep.subr.bf16.mxu0 0
        %1812 = vmatpush1.bf16.msra.mxu0 0
        %1813 = vmatprep.subr.bf16.mxu0 0
        %1814 = vmatpush1.bf16.msra.mxu0 0
        %1815 = vmatprep.mubr.bf16.mxu0 0
        %1816 = vmatmul.mubr.bf16.gmra.mrb[0].mxu0 %v1778
        %v1817 = vpop.f32.mrb[0].mxu0
        %v1818 = vadd.f32 0.0, %v1817
        %v1819 = vpop.f32.mrb[0].mxu0
        %v1820 = vpop.f32.mrb[0].mxu0
        %v1821 = vpop.f32.mrb[0].mxu0
        %1822 = vdwg.mxu0
        %1823 = vst.msk [vmem:[#allocation2 + $0x8] sm:$0xff] %vm1235, %v1818
        %1825 = vrot.lane.b32.xlu0 %v1230, 96
        %v1826 = vpop.permute.xlu0 %1825
        %1828 = vrot.lane.b32.xlu0 %v1232, 96
        %v1829 = vpop.permute.xlu0 %1828
        %v1831 = vsel %vm1235, %v1826, 0
        %v1834 = vsel %vm1235, %v1829, 0
        %1836 = vmatprep.subr.bf16.mxu0 0
        %1837 = vmatpush1.bf16.xpose.msra.mxu0 %v1834
        %1838 = vmatprep.subr.bf16.mxu0 0
        %1839 = vmatpush1.bf16.xpose.msra.mxu0 0
        %1840 = vmatprep.subr.bf16.mxu0 0
        %1841 = vmatpush1.bf16.xpose.msra.mxu0 0
        %1842 = vmatprep.subr.bf16.mxu0 0
        %1843 = vmatpush1.bf16.xpose.msra.mxu0 0
        %1844 = vmatprep.subr.bf16.mxu0 0
        %1845 = vmatpush1.bf16.xpose.msra.mxu0 0
        %1846 = vmatprep.subr.bf16.mxu0 0
        %1847 = vmatpush1.bf16.xpose.msra.mxu0 0
        %1848 = vmatprep.subr.bf16.mxu0 0
        %1849 = vmatpush1.bf16.xpose.msra.mxu0 0
        %1850 = vmatprep.subr.bf16.mxu0 0
        %1851 = vmatpush1.bf16.xpose.msra.mxu0 0
        %1852 = vmatprep.subr.bf16.mxu0 0
        %1853 = vmatpush1.bf16.xpose.msra.mxu0 0
        %1854 = vmatprep.subr.bf16.mxu0 0
        %1855 = vmatpush1.bf16.xpose.msra.mxu0 0
        %1856 = vmatprep.subr.bf16.mxu0 0
        %1857 = vmatpush1.bf16.xpose.msra.mxu0 0
        %1858 = vmatprep.subr.bf16.mxu0 0
        %1859 = vmatpush1.bf16.xpose.msra.mxu0 0
        %1860 = vmatprep.subr.bf16.mxu0 0
        %1861 = vmatpush1.bf16.xpose.msra.mxu0 0
        %1862 = vmatprep.subr.bf16.mxu0 0
        %1863 = vmatpush1.bf16.xpose.msra.mxu0 0
        %1864 = vmatprep.subr.bf16.mxu0 0
        %1865 = vmatpush1.bf16.xpose.msra.mxu0 0
        %1866 = vmatprep.subr.bf16.mxu0 0
        %1867 = vmatpush1.bf16.xpose.msra.mxu0 0
        %1868 = vmatprep.mubr.bf16.mxu0 0
        %1869 = vmatmul.mubr.bf16.gmra.mrb[0].mxu0 %v1831
        %v1870 = vpop.f32.mrb[0].mxu0
        %v1871 = vadd.f32 0.0, %v1870
        %v1872 = vpop.f32.mrb[0].mxu0
        %v1873 = vpop.f32.mrb[0].mxu0
        %v1874 = vpop.f32.mrb[0].mxu0
        %1875 = vdwg.mxu0
        %v1876 = vsel %vm1282, %v1871, -inf
        %1877 = vmax.xlane.f32.xlu0 %v1876
        %v1878 = vpop.xlane.xlu0 %1877
        %v1879 = vsub.f32 %v1871, %v1878
        %v1880 = vmul.f32 %v1879, 1.442695
        %v1881 = vpow.pop %v1880
        %v1882 = vsel %vm1282, %v1881, 0.0
        %1883 = vadd.xlane.f32.xlu0 %v1882
        %v1884 = vpop.xlane.xlu0 %1883
        %v1885 = vrcp.pop %v1884
        %v1886 = vmul.f32 %v1881, %v1885
        %1888 = vrot.lane.b32.xlu0 %v1886, 40
        %v1889 = vpop.permute.xlu0 %1888
        %vm1891 = vcmask 392512
        %1892 = vst.msk [vmem:[%s516] sm:$0xff] %vm1891, %v1889
        %v1893 = vpack.c.bf16 %v1886, %v1886
        %1895 = vrot.lane.b32.xlu0 %v1234, 96
        %v1896 = vpop.permute.xlu0 %1895
        %v1898 = vsel %vm1282, %v1893, 0
        %v1901 = vsel %vm1299, %v1896, 0
        %1903 = vmatprep.subr.bf16.mxu0 0
        %1904 = vmatpush1.bf16.msra.mxu0 %v1901
        %1905 = vmatprep.subr.bf16.mxu0 0
        %1906 = vmatpush1.bf16.msra.mxu0 0
        %1907 = vmatprep.subr.bf16.mxu0 0
        %1908 = vmatpush1.bf16.msra.mxu0 0
        %1909 = vmatprep.subr.bf16.mxu0 0
        %1910 = vmatpush1.bf16.msra.mxu0 0
        %1911 = vmatprep.subr.bf16.mxu0 0
        %1912 = vmatpush1.bf16.msra.mxu0 0
        %1913 = vmatprep.subr.bf16.mxu0 0
        %1914 = vmatpush1.bf16.msra.mxu0 0
        %1915 = vmatprep.subr.bf16.mxu0 0
        %1916 = vmatpush1.bf16.msra.mxu0 0
        %1917 = vmatprep.subr.bf16.mxu0 0
        %1918 = vmatpush1.bf16.msra.mxu0 0
        %1919 = vmatprep.subr.bf16.mxu0 0
        %1920 = vmatpush1.bf16.msra.mxu0 0
        %1921 = vmatprep.subr.bf16.mxu0 0
        %1922 = vmatpush1.bf16.msra.mxu0 0
        %1923 = vmatprep.subr.bf16.mxu0 0
        %1924 = vmatpush1.bf16.msra.mxu0 0
        %1925 = vmatprep.subr.bf16.mxu0 0
        %1926 = vmatpush1.bf16.msra.mxu0 0
        %1927 = vmatprep.subr.bf16.mxu0 0
        %1928 = vmatpush1.bf16.msra.mxu0 0
        %1929 = vmatprep.subr.bf16.mxu0 0
        %1930 = vmatpush1.bf16.msra.mxu0 0
        %1931 = vmatprep.subr.bf16.mxu0 0
        %1932 = vmatpush1.bf16.msra.mxu0 0
        %1933 = vmatprep.subr.bf16.mxu0 0
        %1934 = vmatpush1.bf16.msra.mxu0 0
        %1935 = vmatprep.mubr.bf16.mxu0 0
        %1936 = vmatmul.mubr.bf16.gmra.mrb[0].mxu0 %v1898
        %v1937 = vpop.f32.mrb[0].mxu0
        %v1938 = vadd.f32 0.0, %v1937
        %v1939 = vpop.f32.mrb[0].mxu0
        %v1940 = vpop.f32.mrb[0].mxu0
        %v1941 = vpop.f32.mrb[0].mxu0
        %1942 = vdwg.mxu0
        %1944 = vrot.lane.b32.xlu0 %v1938, 32
        %v1945 = vpop.permute.xlu0 %1944
        %1947 = vst.msk [vmem:[#allocation2 + $0x8] sm:$0xff] %vm1467, %v1945
        %1948 = vrot.lane.b32.xlu0 %v1230, 64
        %v1949 = vpop.permute.xlu0 %1948
        %1950 = vrot.lane.b32.xlu0 %v1232, 64
        %v1951 = vpop.permute.xlu0 %1950
        %v1953 = vsel %vm1235, %v1949, 0
        %v1956 = vsel %vm1235, %v1951, 0
        %1958 = vmatprep.subr.bf16.mxu0 0
        %1959 = vmatpush1.bf16.xpose.msra.mxu0 %v1956
        %1960 = vmatprep.subr.bf16.mxu0 0
        %1961 = vmatpush1.bf16.xpose.msra.mxu0 0
        %1962 = vmatprep.subr.bf16.mxu0 0
        %1963 = vmatpush1.bf16.xpose.msra.mxu0 0
        %1964 = vmatprep.subr.bf16.mxu0 0
        %1965 = vmatpush1.bf16.xpose.msra.mxu0 0
        %1966 = vmatprep.subr.bf16.mxu0 0
        %1967 = vmatpush1.bf16.xpose.msra.mxu0 0
        %1968 = vmatprep.subr.bf16.mxu0 0
        %1969 = vmatpush1.bf16.xpose.msra.mxu0 0
        %1970 = vmatprep.subr.bf16.mxu0 0
        %1971 = vmatpush1.bf16.xpose.msra.mxu0 0
        %1972 = vmatprep.subr.bf16.mxu0 0
        %1973 = vmatpush1.bf16.xpose.msra.mxu0 0
        %1974 = vmatprep.subr.bf16.mxu0 0
        %1975 = vmatpush1.bf16.xpose.msra.mxu0 0
        %1976 = vmatprep.subr.bf16.mxu0 0
        %1977 = vmatpush1.bf16.xpose.msra.mxu0 0
        %1978 = vmatprep.subr.bf16.mxu0 0
        %1979 = vmatpush1.bf16.xpose.msra.mxu0 0
        %1980 = vmatprep.subr.bf16.mxu0 0
        %1981 = vmatpush1.bf16.xpose.msra.mxu0 0
        %1982 = vmatprep.subr.bf16.mxu0 0
        %1983 = vmatpush1.bf16.xpose.msra.mxu0 0
        %1984 = vmatprep.subr.bf16.mxu0 0
        %1985 = vmatpush1.bf16.xpose.msra.mxu0 0
        %1986 = vmatprep.subr.bf16.mxu0 0
        %1987 = vmatpush1.bf16.xpose.msra.mxu0 0
        %1988 = vmatprep.subr.bf16.mxu0 0
        %1989 = vmatpush1.bf16.xpose.msra.mxu0 0
        %1990 = vmatprep.mubr.bf16.mxu0 0
        %1991 = vmatmul.mubr.bf16.gmra.mrb[0].mxu0 %v1953
        %v1992 = vpop.f32.mrb[0].mxu0
        %v1993 = vadd.f32 0.0, %v1992
        %v1994 = vpop.f32.mrb[0].mxu0
        %v1995 = vpop.f32.mrb[0].mxu0
        %v1996 = vpop.f32.mrb[0].mxu0
        %1997 = vdwg.mxu0
        %v1998 = vsel %vm1282, %v1993, -inf
        %1999 = vmax.xlane.f32.xlu0 %v1998
        %v2000 = vpop.xlane.xlu0 %1999
        %v2001 = vsub.f32 %v1993, %v2000
        %v2002 = vmul.f32 %v2001, 1.442695
        %v2003 = vpow.pop %v2002
        %v2004 = vsel %vm1282, %v2003, 0.0
        %2005 = vadd.xlane.f32.xlu0 %v2004
        %v2006 = vpop.xlane.xlu0 %2005
        %v2007 = vrcp.pop %v2006
        %v2008 = vmul.f32 %v2003, %v2007
        %2010 = vrot.lane.b32.xlu0 %v2008, 48
        %v2011 = vpop.permute.xlu0 %2010
        %vm2013 = vcmask 458112
        %2014 = vst.msk [vmem:[%s516] sm:$0xff] %vm2013, %v2011
        %v2015 = vpack.c.bf16 %v2008, %v2008
        %2016 = vrot.lane.b32.xlu0 %v1234, 64
        %v2017 = vpop.permute.xlu0 %2016
        %v2019 = vsel %vm1282, %v2015, 0
        %v2022 = vsel %vm1299, %v2017, 0
        %2024 = vmatprep.subr.bf16.mxu0 0
        %2025 = vmatpush1.bf16.msra.mxu0 %v2022
        %2026 = vmatprep.subr.bf16.mxu0 0
        %2027 = vmatpush1.bf16.msra.mxu0 0
        %2028 = vmatprep.subr.bf16.mxu0 0
        %2029 = vmatpush1.bf16.msra.mxu0 0
        %2030 = vmatprep.subr.bf16.mxu0 0
        %2031 = vmatpush1.bf16.msra.mxu0 0
        %2032 = vmatprep.subr.bf16.mxu0 0
        %2033 = vmatpush1.bf16.msra.mxu0 0
        %2034 = vmatprep.subr.bf16.mxu0 0
        %2035 = vmatpush1.bf16.msra.mxu0 0
        %2036 = vmatprep.subr.bf16.mxu0 0
        %2037 = vmatpush1.bf16.msra.mxu0 0
        %2038 = vmatprep.subr.bf16.mxu0 0
        %2039 = vmatpush1.bf16.msra.mxu0 0
        %2040 = vmatprep.subr.bf16.mxu0 0
        %2041 = vmatpush1.bf16.msra.mxu0 0
        %2042 = vmatprep.subr.bf16.mxu0 0
        %2043 = vmatpush1.bf16.msra.mxu0 0
        %2044 = vmatprep.subr.bf16.mxu0 0
        %2045 = vmatpush1.bf16.msra.mxu0 0
        %2046 = vmatprep.subr.bf16.mxu0 0
        %2047 = vmatpush1.bf16.msra.mxu0 0
        %2048 = vmatprep.subr.bf16.mxu0 0
        %2049 = vmatpush1.bf16.msra.mxu0 0
        %2050 = vmatprep.subr.bf16.mxu0 0
        %2051 = vmatpush1.bf16.msra.mxu0 0
        %2052 = vmatprep.subr.bf16.mxu0 0
        %2053 = vmatpush1.bf16.msra.mxu0 0
        %2054 = vmatprep.subr.bf16.mxu0 0
        %2055 = vmatpush1.bf16.msra.mxu0 0
        %2056 = vmatprep.mubr.bf16.mxu0 0
        %2057 = vmatmul.mubr.bf16.gmra.mrb[0].mxu0 %v2019
        %v2058 = vpop.f32.mrb[0].mxu0
        %v2059 = vadd.f32 0.0, %v2058
        %v2060 = vpop.f32.mrb[0].mxu0
        %v2061 = vpop.f32.mrb[0].mxu0
        %v2062 = vpop.f32.mrb[0].mxu0
        %2063 = vdwg.mxu0
        %2065 = vrot.lane.b32.xlu0 %v2059, 64
        %v2066 = vpop.permute.xlu0 %2065
        %2068 = vst.msk [vmem:[#allocation2 + $0x8] sm:$0xff] %vm1589, %v2066
        %2069 = vrot.lane.b32.xlu0 %v1230, 32
        %v2070 = vpop.permute.xlu0 %2069
        %2071 = vrot.lane.b32.xlu0 %v1232, 32
        %v2072 = vpop.permute.xlu0 %2071
        %v2074 = vsel %vm1235, %v2070, 0
        %v2077 = vsel %vm1235, %v2072, 0
        %2079 = vmatprep.subr.bf16.mxu0 0
        %2080 = vmatpush1.bf16.xpose.msra.mxu0 %v2077
        %2081 = vmatprep.subr.bf16.mxu0 0
        %2082 = vmatpush1.bf16.xpose.msra.mxu0 0
        %2083 = vmatprep.subr.bf16.mxu0 0
        %2084 = vmatpush1.bf16.xpose.msra.mxu0 0
        %2085 = vmatprep.subr.bf16.mxu0 0
        %2086 = vmatpush1.bf16.xpose.msra.mxu0 0
        %2087 = vmatprep.subr.bf16.mxu0 0
        %2088 = vmatpush1.bf16.xpose.msra.mxu0 0
        %2089 = vmatprep.subr.bf16.mxu0 0
        %2090 = vmatpush1.bf16.xpose.msra.mxu0 0
        %2091 = vmatprep.subr.bf16.mxu0 0
        %2092 = vmatpush1.bf16.xpose.msra.mxu0 0
        %2093 = vmatprep.subr.bf16.mxu0 0
        %2094 = vmatpush1.bf16.xpose.msra.mxu0 0
        %2095 = vmatprep.subr.bf16.mxu0 0
        %2096 = vmatpush1.bf16.xpose.msra.mxu0 0
        %2097 = vmatprep.subr.bf16.mxu0 0
        %2098 = vmatpush1.bf16.xpose.msra.mxu0 0
        %2099 = vmatprep.subr.bf16.mxu0 0
        %2100 = vmatpush1.bf16.xpose.msra.mxu0 0
        %2101 = vmatprep.subr.bf16.mxu0 0
        %2102 = vmatpush1.bf16.xpose.msra.mxu0 0
        %2103 = vmatprep.subr.bf16.mxu0 0
        %2104 = vmatpush1.bf16.xpose.msra.mxu0 0
        %2105 = vmatprep.subr.bf16.mxu0 0
        %2106 = vmatpush1.bf16.xpose.msra.mxu0 0
        %2107 = vmatprep.subr.bf16.mxu0 0
        %2108 = vmatpush1.bf16.xpose.msra.mxu0 0
        %2109 = vmatprep.subr.bf16.mxu0 0
        %2110 = vmatpush1.bf16.xpose.msra.mxu0 0
        %2111 = vmatprep.mubr.bf16.mxu0 0
        %2112 = vmatmul.mubr.bf16.gmra.mrb[0].mxu0 %v2074
        %v2113 = vpop.f32.mrb[0].mxu0
        %v2114 = vadd.f32 0.0, %v2113
        %v2115 = vpop.f32.mrb[0].mxu0
        %v2116 = vpop.f32.mrb[0].mxu0
        %v2117 = vpop.f32.mrb[0].mxu0
        %2118 = vdwg.mxu0
        %v2119 = vsel %vm1282, %v2114, -inf
        %2120 = vmax.xlane.f32.xlu0 %v2119
        %v2121 = vpop.xlane.xlu0 %2120
        %v2122 = vsub.f32 %v2114, %v2121
        %v2123 = vmul.f32 %v2122, 1.442695
        %v2124 = vpow.pop %v2123
        %v2125 = vsel %vm1282, %v2124, 0.0
        %2126 = vadd.xlane.f32.xlu0 %v2125
        %v2127 = vpop.xlane.xlu0 %2126
        %v2128 = vrcp.pop %v2127
        %v2129 = vmul.f32 %v2124, %v2128
        %2131 = vrot.lane.b32.xlu0 %v2129, 56
        %v2132 = vpop.permute.xlu0 %2131
        %vm2134 = vcmask 523712
        %2135 = vst.msk [vmem:[%s516] sm:$0xff] %vm2134, %v2132
        %v2136 = vpack.c.bf16 %v2129, %v2129
        %2137 = vrot.lane.b32.xlu0 %v1234, 32
        %v2138 = vpop.permute.xlu0 %2137
        %v2140 = vsel %vm1282, %v2136, 0
        %v2143 = vsel %vm1299, %v2138, 0
        %2145 = vmatprep.subr.bf16.mxu0 0
        %2146 = vmatpush1.bf16.msra.mxu0 %v2143
        %2147 = vmatprep.subr.bf16.mxu0 0
        %2148 = vmatpush1.bf16.msra.mxu0 0
        %2149 = vmatprep.subr.bf16.mxu0 0
        %2150 = vmatpush1.bf16.msra.mxu0 0
        %2151 = vmatprep.subr.bf16.mxu0 0
        %2152 = vmatpush1.bf16.msra.mxu0 0
        %2153 = vmatprep.subr.bf16.mxu0 0
        %2154 = vmatpush1.bf16.msra.mxu0 0
        %2155 = vmatprep.subr.bf16.mxu0 0
        %2156 = vmatpush1.bf16.msra.mxu0 0
        %2157 = vmatprep.subr.bf16.mxu0 0
        %2158 = vmatpush1.bf16.msra.mxu0 0
        %2159 = vmatprep.subr.bf16.mxu0 0
        %2160 = vmatpush1.bf16.msra.mxu0 0
        %2161 = vmatprep.subr.bf16.mxu0 0
        %2162 = vmatpush1.bf16.msra.mxu0 0
        %2163 = vmatprep.subr.bf16.mxu0 0
        %2164 = vmatpush1.bf16.msra.mxu0 0
        %2165 = vmatprep.subr.bf16.mxu0 0
        %2166 = vmatpush1.bf16.msra.mxu0 0
        %2167 = vmatprep.subr.bf16.mxu0 0
        %2168 = vmatpush1.bf16.msra.mxu0 0
        %2169 = vmatprep.subr.bf16.mxu0 0
        %2170 = vmatpush1.bf16.msra.mxu0 0
        %2171 = vmatprep.subr.bf16.mxu0 0
        %2172 = vmatpush1.bf16.msra.mxu0 0
        %2173 = vmatprep.subr.bf16.mxu0 0
        %2174 = vmatpush1.bf16.msra.mxu0 0
        %2175 = vmatprep.subr.bf16.mxu0 0
        %2176 = vmatpush1.bf16.msra.mxu0 0
        %2177 = vmatprep.mubr.bf16.mxu0 0
        %2178 = vmatmul.mubr.bf16.gmra.mrb[0].mxu0 %v2140
        %v2179 = vpop.f32.mrb[0].mxu0
        %v2180 = vadd.f32 0.0, %v2179
        %v2181 = vpop.f32.mrb[0].mxu0
        %v2182 = vpop.f32.mrb[0].mxu0
        %v2183 = vpop.f32.mrb[0].mxu0
        %2184 = vdwg.mxu0
        %2186 = vrot.lane.b32.xlu0 %v2180, 96
        %v2187 = vpop.permute.xlu0 %2186
        %2189 = vst.msk [vmem:[#allocation2 + $0x8] sm:$0xff] %vm1711, %v2187
        %v2190 = vld [vmem:[#allocation2] sm:$0xff]
        %v2191 = vld [vmem:[#allocation2 + $0x8] sm:$0xff]
        %v2192 = vpack.c.bf16 %v2190, %v2190
        %v2193 = vpack.c.bf16 %v2191, %v2191
        %v2194 = vld [vmem:[#allocation14] sm:$0xff]
        %v2195 = vld [vmem:[#allocation14 + $0x8] sm:$0xff]
        %v2196 = vld [vmem:[#allocation14 + $0x10] sm:$0xff]
        %v2197 = vld [vmem:[#allocation14 + $0x18] sm:$0xff]
        %v2198 = vld [vmem:[#allocation14 + $0x20] sm:$0xff]
        %v2199 = vld [vmem:[#allocation14 + $0x28] sm:$0xff]
        %v2200 = vld [vmem:[#allocation14 + $0x30] sm:$0xff]
        %v2201 = vld [vmem:[#allocation14 + $0x38] sm:$0xff]
        %v2202 = vld [vmem:[#allocation14 + $0x40] sm:$0xff]
        %v2203 = vld [vmem:[#allocation14 + $0x48] sm:$0xff]
        %v2204 = vld [vmem:[#allocation14 + $0x50] sm:$0xff]
        %v2205 = vld [vmem:[#allocation14 + $0x58] sm:$0xff]
        %v2206 = vld [vmem:[#allocation14 + $0x60] sm:$0xff]
        %v2207 = vld [vmem:[#allocation14 + $0x68] sm:$0xff]
        %v2208 = vld [vmem:[#allocation14 + $0x70] sm:$0xff]
        %v2209 = vld [vmem:[#allocation14 + $0x78] sm:$0xff]
        %v2210 = vld [vmem:[#allocation14 + $0x80] sm:$0xff]
        %v2211 = vld [vmem:[#allocation14 + $0x88] sm:$0xff]
        %v2212 = vld [vmem:[#allocation14 + $0x90] sm:$0xff]
        %v2213 = vld [vmem:[#allocation14 + $0x98] sm:$0xff]
        %v2214 = vld [vmem:[#allocation14 + $0xa0] sm:$0xff]
        %v2215 = vld [vmem:[#allocation14 + $0xa8] sm:$0xff]
        %v2216 = vld [vmem:[#allocation14 + $0xb0] sm:$0xff]
        %v2217 = vld [vmem:[#allocation14 + $0xb8] sm:$0xff]
        %v2218 = vld [vmem:[#allocation14 + $0xc0] sm:$0xff]
        %v2219 = vld [vmem:[#allocation14 + $0xc8] sm:$0xff]
        %v2220 = vld [vmem:[#allocation14 + $0xd0] sm:$0xff]
        %v2221 = vld [vmem:[#allocation14 + $0xd8] sm:$0xff]
        %v2222 = vld [vmem:[#allocation14 + $0xe0] sm:$0xff]
        %v2223 = vld [vmem:[#allocation14 + $0xe8] sm:$0xff]
        %v2224 = vld [vmem:[#allocation14 + $0xf0] sm:$0xff]
        %v2225 = vld [vmem:[#allocation14 + $0xf8] sm:$0xff]
        %v2226 = vld [vmem:[%s7] sm:$0x3]
        %v2228 = vlaneseq
        %v2229 = vshrl.u32 %v2228, 7
        %v2230 = vsub.s32 0, %v2229
        %v2231 = vrot.slane %v2226, %v2230
        %v2232 = vlaneseq
        %v2233 = vshrl.u32 %v2232, 7
        %v2234 = vsub.s32 1, %v2233
        %v2235 = vrot.slane %v2226, %v2234
        %v2270 = vunpack.c.l.b16 %v2194
        %v2271 = vunpack.c.h.b16 %v2194
        %v2272 = vunpack.c.l.b16 %v2195
        %v2273 = vunpack.c.h.b16 %v2195
        %v2274 = vunpack.c.l.b16 %v2196
        %v2275 = vunpack.c.h.b16 %v2196
        %v2276 = vunpack.c.l.b16 %v2197
        %v2277 = vunpack.c.h.b16 %v2197
        %v2278 = vunpack.c.l.b16 %v2198
        %v2279 = vunpack.c.h.b16 %v2198
        %v2280 = vunpack.c.l.b16 %v2199
        %v2281 = vunpack.c.h.b16 %v2199
        %v2282 = vunpack.c.l.b16 %v2200
        %v2283 = vunpack.c.h.b16 %v2200
        %v2284 = vunpack.c.l.b16 %v2201
        %v2285 = vunpack.c.h.b16 %v2201
        %v2286 = vunpack.c.l.b16 %v2202
        %v2287 = vunpack.c.h.b16 %v2202
        %v2288 = vunpack.c.l.b16 %v2203
        %v2289 = vunpack.c.h.b16 %v2203
        %v2290 = vunpack.c.l.b16 %v2204
        %v2291 = vunpack.c.h.b16 %v2204
        %v2292 = vunpack.c.l.b16 %v2205
        %v2293 = vunpack.c.h.b16 %v2205
        %v2294 = vunpack.c.l.b16 %v2206
        %v2295 = vunpack.c.h.b16 %v2206
        %v2296 = vunpack.c.l.b16 %v2207
        %v2297 = vunpack.c.h.b16 %v2207
        %v2298 = vunpack.c.l.b16 %v2208
        %v2299 = vunpack.c.h.b16 %v2208
        %v2300 = vunpack.c.l.b16 %v2209
        %v2301 = vunpack.c.h.b16 %v2209
        %v2302 = vunpack.c.l.b16 %v2210
        %v2303 = vunpack.c.h.b16 %v2210
        %v2304 = vunpack.c.l.b16 %v2211
        %v2305 = vunpack.c.h.b16 %v2211
        %v2306 = vunpack.c.l.b16 %v2212
        %v2307 = vunpack.c.h.b16 %v2212
        %v2308 = vunpack.c.l.b16 %v2213
        %v2309 = vunpack.c.h.b16 %v2213
        %v2310 = vunpack.c.l.b16 %v2214
        %v2311 = vunpack.c.h.b16 %v2214
        %v2312 = vunpack.c.l.b16 %v2215
        %v2313 = vunpack.c.h.b16 %v2215
        %v2314 = vunpack.c.l.b16 %v2216
        %v2315 = vunpack.c.h.b16 %v2216
        %v2316 = vunpack.c.l.b16 %v2217
        %v2317 = vunpack.c.h.b16 %v2217
        %v2318 = vunpack.c.l.b16 %v2218
        %v2319 = vunpack.c.h.b16 %v2218
        %v2320 = vunpack.c.l.b16 %v2219
        %v2321 = vunpack.c.h.b16 %v2219
        %v2322 = vunpack.c.l.b16 %v2220
        %v2323 = vunpack.c.h.b16 %v2220
        %v2324 = vunpack.c.l.b16 %v2221
        %v2325 = vunpack.c.h.b16 %v2221
        %v2326 = vunpack.c.l.b16 %v2222
        %v2327 = vunpack.c.h.b16 %v2222
        %v2328 = vunpack.c.l.b16 %v2223
        %v2329 = vunpack.c.h.b16 %v2223
        %v2330 = vunpack.c.l.b16 %v2224
        %v2331 = vunpack.c.h.b16 %v2224
        %v2332 = vunpack.c.l.b16 %v2225
        %v2333 = vunpack.c.h.b16 %v2225
        %v2334 = vpack.c.b16 %v2272, %v2270
        %v2335 = vpack.c.b16 %v2273, %v2271
        %v2336 = vpack.c.b16 %v2276, %v2274
        %v2337 = vpack.c.b16 %v2277, %v2275
        %v2338 = vpack.c.b16 %v2280, %v2278
        %v2339 = vpack.c.b16 %v2281, %v2279
        %v2340 = vpack.c.b16 %v2284, %v2282
        %v2341 = vpack.c.b16 %v2285, %v2283
        %v2342 = vpack.c.b16 %v2288, %v2286
        %v2343 = vpack.c.b16 %v2289, %v2287
        %v2344 = vpack.c.b16 %v2292, %v2290
        %v2345 = vpack.c.b16 %v2293, %v2291
        %v2346 = vpack.c.b16 %v2296, %v2294
        %v2347 = vpack.c.b16 %v2297, %v2295
        %v2348 = vpack.c.b16 %v2300, %v2298
        %v2349 = vpack.c.b16 %v2301, %v2299
        %v2350 = vpack.c.b16 %v2304, %v2302
        %v2351 = vpack.c.b16 %v2305, %v2303
        %v2352 = vpack.c.b16 %v2308, %v2306
        %v2353 = vpack.c.b16 %v2309, %v2307
        %v2354 = vpack.c.b16 %v2312, %v2310
        %v2355 = vpack.c.b16 %v2313, %v2311
        %v2356 = vpack.c.b16 %v2316, %v2314
        %v2357 = vpack.c.b16 %v2317, %v2315
        %v2358 = vpack.c.b16 %v2320, %v2318
        %v2359 = vpack.c.b16 %v2321, %v2319
        %v2360 = vpack.c.b16 %v2324, %v2322
        %v2361 = vpack.c.b16 %v2325, %v2323
        %v2362 = vpack.c.b16 %v2328, %v2326
        %v2363 = vpack.c.b16 %v2329, %v2327
        %v2364 = vpack.c.b16 %v2332, %v2330
        %v2365 = vpack.c.b16 %v2333, %v2331
        %2398 = vmatprep.subr.bf16.mxu0 %v2335
        %2399 = vmatpush1.bf16.msra.mxu0 %v2334
        %2400 = vmatprep.subr.bf16.mxu0 %v2337
        %2401 = vmatpush1.bf16.msra.mxu0 %v2336
        %2402 = vmatprep.subr.bf16.mxu0 %v2339
        %2403 = vmatpush1.bf16.msra.mxu0 %v2338
        %2404 = vmatprep.subr.bf16.mxu0 %v2341
        %2405 = vmatpush1.bf16.msra.mxu0 %v2340
        %2406 = vmatprep.subr.bf16.mxu0 %v2343
        %2407 = vmatpush1.bf16.msra.mxu0 %v2342
        %2408 = vmatprep.subr.bf16.mxu0 %v2345
        %2409 = vmatpush1.bf16.msra.mxu0 %v2344
        %2410 = vmatprep.subr.bf16.mxu0 %v2347
        %2411 = vmatpush1.bf16.msra.mxu0 %v2346
        %2412 = vmatprep.subr.bf16.mxu0 %v2349
        %2413 = vmatpush1.bf16.msra.mxu0 %v2348
        %2414 = vmatprep.subr.bf16.mxu0 %v2351
        %2415 = vmatpush1.bf16.msra.mxu0 %v2350
        %2416 = vmatprep.subr.bf16.mxu0 %v2353
        %2417 = vmatpush1.bf16.msra.mxu0 %v2352
        %2418 = vmatprep.subr.bf16.mxu0 %v2355
        %2419 = vmatpush1.bf16.msra.mxu0 %v2354
        %2420 = vmatprep.subr.bf16.mxu0 %v2357
        %2421 = vmatpush1.bf16.msra.mxu0 %v2356
        %2422 = vmatprep.subr.bf16.mxu0 %v2359
        %2423 = vmatpush1.bf16.msra.mxu0 %v2358
        %2424 = vmatprep.subr.bf16.mxu0 %v2361
        %2425 = vmatpush1.bf16.msra.mxu0 %v2360
        %2426 = vmatprep.subr.bf16.mxu0 %v2363
        %2427 = vmatpush1.bf16.msra.mxu0 %v2362
        %2428 = vmatprep.subr.bf16.mxu0 %v2365
        %2429 = vmatpush1.bf16.msra.mxu0 %v2364
        %2430 = vmatprep.mubr.bf16.mxu0 %v2193
        %2431 = vmatmul.mubr.bf16.gmra.mrb[0].mxu0 %v2192
        %v2432 = vpop.f32.mrb[0].mxu0
        %v2433 = vadd.f32 %v2231, %v2432
        %v2434 = vpop.f32.mrb[0].mxu0
        %v2435 = vadd.f32 %v2235, %v2434
        %v2436 = vpop.f32.mrb[0].mxu0
        %v2437 = vpop.f32.mrb[0].mxu0
        %2438 = vdwg.mxu0
        %2439 = vst [vmem:[%s500] sm:$0xff] %v2433
        %2440 = vst [vmem:[%s500 + $0x8] sm:$0xff] %v2435
        %s2441 = sand.u32 %s239, 1
        %s2442 = scalar_lea.sflag [#allocation5], %s2441
        %s2443 = sand.u32 %s239, 1
        %s2444 = smul.addr %s2443, 16
        %s2445 = scalar_lea.vmem [#allocation15], %s2444
        %p2446 = scmp.lt.s32.totalorder %s36, 1
        %s2447 = scalar_select %p2446, %s36, 1
        %p2448 = scmp.lt.s32.totalorder %s37, 0
        %s2449 = scalar_select %p2448, %s37, 0
        %s2450 = sadd.s32 %s2449, %s2447
        %s2451 = smul.addr %s2450, 8
        %s2452 = scalar_lea.vmem %s9, %s2451
        // Predicated region
        $region81: #{multi_head_attention.1} parent=51 // pred_check
          %p2453 = pneg %p249
        $region82: #{multi_head_attention.1} parent=51 // pred_check_branch
          %2455 = sbr.rel (%p2453) target = $region84
        $region83: #{multi_head_attention.1} parent=51 // pred_region
          %s2457 = ssub.s32 256, 256
          %2458 = vsyncadd %s2442, %s2457
          %s2459 = smul.addr %s37, 2
          %s2460 = smul.addr %s36, 2
          %s2461 = sadd.s32 %s2459, %s2460
          %s2462 = smul.addr %s2461, 128
          %s2463 = scalar_lea.hbm %s8, %s2462
          %s2465 = sshll.u32 %s2445, 4
          %s2466 = int_to_ptr.vmem [resolvable:$true] %s2465
          %2468 = dma.vmem_to_hbm [thread:$0]  %s2466, 256, %s2463, %s2442
        $region84: #{multi_head_attention.1} parent=51 // pred_fallthru
          _
        // Predicated region
        $region85: #{multi_head_attention.1} parent=51 // pred_check
          %p2469 = pneg %p277
        $region86: #{multi_head_attention.1} parent=51 // pred_check_branch
          %2471 = sbr.rel (%p2469) target = $region88
        $region87: #{multi_head_attention.1} parent=51 // pred_region
          _
        $region88: #{multi_head_attention.1} parent=51 // pred_fallthru
          _
      $region52: #{multi_head_attention.1} parent=5 // pred_fallthru
        _
      %p2472 = scmp.le.s32.totalorder 2, %s27
      // Predicated region
      $region89: #{multi_head_attention.1} parent=5 // pred_check
        %p2473 = pneg %p2472
      $region90: #{multi_head_attention.1} parent=5 // pred_check_branch
        %2475 = sbr.rel (%p2473) target = $region92
      $region91: #{multi_head_attention.1} parent=5 // pred_region
        %s2476 = ssub.s32 %s27, 2
        // Predicated region
        $region93: #{multi_head_attention.1} parent=91 // pred_check
          %p2477 = pneg %p255
        $region94: #{multi_head_attention.1} parent=91 // pred_check_branch
          %2479 = sbr.rel (%p2477) target = $region96
        $region95: #{multi_head_attention.1} parent=91 // pred_region
          %s2480 = sand.u32 %s240, 1
          %s2481 = scalar_lea.sflag [#allocation5], %s2480
          %s2482 = sand.u32 %s240, 1
          %s2483 = smul.addr %s2482, 16
          %s2484 = scalar_lea.vmem [#allocation15], %s2483
          %2485 = dma.done %s2481, 256
        $region96: #{multi_head_attention.1} parent=91 // pred_fallthru
          _
        // Predicated region
        $region97: #{multi_head_attention.1} parent=91 // pred_check
          %p2486 = pneg %p283
        $region98: #{multi_head_attention.1} parent=91 // pred_check_branch
          %2488 = sbr.rel (%p2486) target = $region100
        $region99: #{multi_head_attention.1} parent=91 // pred_region
          %p2489 = scmp.lt.s32.totalorder %s38, 1
          %s2490 = scalar_select %p2489, %s38, 1
          %p2491 = scmp.lt.s32.totalorder %s39, 0
          %s2492 = scalar_select %p2491, %s39, 0
          %s2493 = sadd.s32 %s2492, %s2490
          %s2494 = smul.addr %s2493, 8
          %s2495 = scalar_lea.vmem %s9, %s2494
        $region100: #{multi_head_attention.1} parent=91 // pred_fallthru
          _
      $region92: #{multi_head_attention.1} parent=5 // pred_fallthru
        _
    $region6: #{multi_head_attention.1} parent=1 // loop_footer
      %s31 = sadd.s32 1, %s27
    $region7: #{multi_head_attention.1} parent=1 // loop_footer_branch
      %26 = sbr.rel target = $region3
    $region8: #{multi_head_attention.1} parent=1 // loop_exit
      _
    %2496 = vsyncpa [#allocation4], 1
    %s2497 = scalar_lea.sflag [#allocation4], 1
    %2498 = vsyncpa %s2497, 1
    %2499 = vsyncpa [#allocation7], 1
    %s2500 = scalar_lea.sflag [#allocation7], 1
    %2501 = vsyncpa %s2500, 1
    %2502 = vsyncpa [#allocation10], 1
    %2503 = vsyncpa [#allocation13], 1
    %2504 = vsyncpa [#allocation5], 1
    %s2505 = scalar_lea.sflag [#allocation5], 1
    %2506 = vsyncpa %s2505, 1

</llo_original>
